<compile_context>
chip_gen: v7x
topology: tpu7x:2x2x1
jax: 0.10.0
libtpu: 0.0.40
codegen_flags: <defaults>
</compile_context>

<pallas_src>
import functools

import jax
import jax.numpy as jnp
from jax.experimental import pallas as pl
from jax.experimental.pallas import tpu as pltpu


def _round_up(x: int, m: int) -> int:
    return (x + m - 1) // m * m


def _fused_kernel(s_ref, a_ref, w_ref, bn_s_ref, bn_b_ref, r_ref, o_ref, acc_ref):
    """Grid = (P//TM, Cout//TN, Cin//TK); the Cin reduction is the last axis."""
    k = pl.program_id(2)

    @pl.when(k == 0)
    def _init():
        acc_ref[...] = jnp.zeros_like(acc_ref)

    # Fused per-input-channel scale (x262 broadcast mul) rides on the VPU while
    # the MXU does the matmul; (1, TK) broadcasts over the TM pixel rows.
    a = a_ref[...] * s_ref[...]
    acc_ref[...] += jnp.dot(a, w_ref[...], preferred_element_type=jnp.float32)

    @pl.when(k == pl.num_programs(2) - 1)
    def _epilogue():
        # Folded BatchNorm (eval): y = acc * scale + bias, then residual + ReLU.
        y = acc_ref[...] * bn_s_ref[...] + bn_b_ref[...]
        y = y + r_ref[...].astype(jnp.float32)
        o_ref[...] = jnp.maximum(y, 0.0).astype(o_ref.dtype)


@functools.partial(jax.jit, static_argnames=("eps", "tm", "tn", "tk"))
def fused_mul_conv_bn_add_relu(
    x262, x257, x251, conv_w, gamma, beta, running_mean, running_var,
    *, eps=1e-5, tm=None, tn=None, tk=None,
):
    """Equivalent of M.forward (with eval-mode BatchNorm)."""
    N, C, H, W = x257.shape
    Cout, Cin = conv_w.shape[0], conv_w.shape[1]
    assert C == Cin and x251.shape == (N, Cout, H, W)

    # ---------- layout prep (wrapper/XLA side, channels-last slabs) ----------
    P = N * H * W
    a = jnp.transpose(x257, (0, 2, 3, 1)).reshape(P, Cin)          # activations
    r = jnp.transpose(x251, (0, 2, 3, 1)).reshape(P, Cout)         # residual
    w = jnp.transpose(conv_w[:, :, 0, 0], (1, 0))                  # (Cin, Cout)
    s_in = x262.reshape(1, Cin)                                    # per-Cin scale
    bn_scale = (gamma / jnp.sqrt(running_var + eps)).astype(jnp.float32)
    bn_bias = (beta - running_mean * bn_scale).astype(jnp.float32)
    bn_scale = bn_scale.reshape(1, Cout)
    bn_bias = bn_bias.reshape(1, Cout)

    # ---------- tile sizes: MXU / vreg aligned, VMEM-safe on v5e/v6e/v7x ----
    if tm is None:
        tm = min(256, _round_up(P, 8))          # pixel rows (sublane axis)
    if tn is None:
        tn = min(512, _round_up(Cout, 128))     # lane-dense output channels
    if tk is None:
        tk = min(512, _round_up(Cin, 128))      # reduction (Cin) depth

    Pp, Kp, Np = _round_up(P, tm), _round_up(Cin, tk), _round_up(Cout, tn)

    a = jnp.pad(a, ((0, Pp - P), (0, Kp - Cin)))
    r = jnp.pad(r, ((0, Pp - P), (0, Np - Cout)))
    w = jnp.pad(w, ((0, Kp - Cin), (0, Np - Cout)))
    s_in = jnp.pad(s_in, ((0, 0), (0, Kp - Cin)))
    bn_scale = jnp.pad(bn_scale, ((0, 0), (0, Np - Cout)))
    bn_bias = jnp.pad(bn_bias, ((0, 0), (0, Np - Cout)))

    grid = (Pp // tm, Np // tn, Kp // tk)

    out = pl.pallas_call(
        _fused_kernel,
        out_shape=jax.ShapeDtypeStruct((Pp, Np), x257.dtype),
        grid_spec=pltpu.PrefetchScalarGridSpec(
            num_scalar_prefetch=0,
            grid=grid,
            in_specs=[
                pl.BlockSpec((1, tk), lambda i, j, k: (0, k)),    # input scale
                pl.BlockSpec((tm, tk), lambda i, j, k: (i, k)),   # activations
                pl.BlockSpec((tk, tn), lambda i, j, k: (k, j)),   # weights (resident across i)
                pl.BlockSpec((1, tn), lambda i, j, k: (0, j)),    # BN scale
                pl.BlockSpec((1, tn), lambda i, j, k: (0, j)),    # BN bias
                pl.BlockSpec((tm, tn), lambda i, j, k: (i, j)),   # residual
            ],
            out_specs=pl.BlockSpec((tm, tn), lambda i, j, k: (i, j)),
            scratch_shapes=[pltpu.VMEM((tm, tn), jnp.float32)],   # f32 accumulator
        ),
        compiler_params=pltpu.CompilerParams(
            dimension_semantics=("parallel", "parallel", "arbitrary"),
            vmem_limit_bytes=64 * 1024 * 1024,   # safe on v7x's 64 MiB, plenty on v5e/v6e
        ),
    )(s_in, a, w, bn_scale, bn_bias, r)

    out = out[:P, :Cout].reshape(N, H, W, Cout)
    return jnp.transpose(out, (0, 3, 1, 2))      # back to NCHW


def _reference(x262, x257, x251, conv_w, gamma, beta, running_mean, running_var,
               eps=1e-5):
    """Pure-JAX reference of M.forward with eval-mode BatchNorm."""
    x263 = x262 * x257
    x264 = jnp.einsum("nchw,oc->nohw", x263, conv_w[:, :, 0, 0])
    scale = gamma / jnp.sqrt(running_var + eps)
    bias = beta - running_mean * scale
    x265 = x264 * scale[None, :, None, None] + bias[None, :, None, None]
    x266 = x251 + x265
    return jnp.maximum(x266, 0.0)


if __name__ == "__main__":
    key = jax.random.PRNGKey(0)
    ks = jax.random.split(key, 8)
    N, C, H, W = 1, 440, 7, 7

    x262 = jax.random.normal(ks[0], (1, C, 1, 1), jnp.float32)
    x257 = jax.random.normal(ks[1], (N, C, H, W), jnp.float32)
    x251 = jax.random.normal(ks[2], (N, C, H, W), jnp.float32)
    conv_w = jax.random.normal(ks[3], (C, C, 1, 1), jnp.float32) * 0.05
    gamma = 1.0 + 0.1 * jax.random.normal(ks[4], (C,), jnp.float32)
    beta = 0.1 * jax.random.normal(ks[5], (C,), jnp.float32)
    running_mean = 0.1 * jax.random.normal(ks[6], (C,), jnp.float32)
    running_var = jnp.abs(jax.random.normal(ks[7], (C,), jnp.float32)) + 0.5

    out = fused_mul_conv_bn_add_relu(
        x262, x257, x251, conv_w, gamma, beta, running_mean, running_var)
    out = jax.block_until_ready(out)

    ref = _reference(x262, x257, x251, conv_w, gamma, beta,
                     running_mean, running_var)
    assert out.shape == (N, C, H, W), out.shape
    max_err = float(jnp.max(jnp.abs(out - ref)))
    assert max_err < 5e-2, f"max abs err {max_err}"
    print("KERNEL_OK")
</pallas_src>

<mosaic_0001>
module attributes {stable_mosaic.version = 11 : i64} {
  func.func @_fused_kernel(%arg0: i32, %arg1: i32, %arg2: i32, %arg3: memref<1x512xf32, #tpu.memory_space<vmem>>, %arg4: memref<56x512xf32, #tpu.memory_space<vmem>>, %arg5: memref<512x512xf32, #tpu.memory_space<vmem>>, %arg6: memref<1x512xf32, #tpu.memory_space<vmem>>, %arg7: memref<1x512xf32, #tpu.memory_space<vmem>>, %arg8: memref<56x512xf32, #tpu.memory_space<vmem>>, %arg9: memref<56x512xf32, #tpu.memory_space<vmem>>, %arg10: memref<56x512xf32, #tpu.memory_space<vmem>>) attributes {dimension_semantics = [#tpu.dimension_semantics<parallel>, #tpu.dimension_semantics<parallel>, #tpu.dimension_semantics<arbitrary>], iteration_bounds = array<i64: 1, 1, 1>, scalar_prefetch = 0 : i64, scratch_operands = 1 : i64, tpu.core_type = #tpu.core_type<tc>, window_params = [{transform_indices = @transform_0, window_bounds = array<i64: 1, 512>}, {transform_indices = @transform_1, window_bounds = array<i64: 56, 512>}, {transform_indices = @transform_2, window_bounds = array<i64: 512, 512>}, {transform_indices = @transform_3, window_bounds = array<i64: 1, 512>}, {transform_indices = @transform_4, window_bounds = array<i64: 1, 512>}, {transform_indices = @transform_5, window_bounds = array<i64: 56, 512>}, {transform_indices = @transform_6, window_bounds = array<i64: 56, 512>}]} {
    %c0_i32 = arith.constant 0 : i32
    %0 = arith.cmpi eq, %arg2, %c0_i32 : i32
    %1 = arith.extui %0 : i1 to i32
    %c0_i32_0 = arith.constant 0 : i32
    %2 = arith.cmpi ne, %1, %c0_i32_0 : i32
    scf.if %2 {
      %cst_12 = arith.constant 0.000000e+00 : f32
      %15 = vector.broadcast %cst_12 : f32 to vector<56x512xf32>
      %c0_13 = arith.constant 0 : index
      %c0_14 = arith.constant 0 : index
      %16 = vector.load %arg10[%c0_13, %c0_14] : memref<56x512xf32, #tpu.memory_space<vmem>>, vector<56x512xf32>
      tpu.vector_store %arg10[%c0_13, %c0_14], %15 {strides = array<i32>} : memref<56x512xf32, #tpu.memory_space<vmem>>, vector<56x512xf32>,
    } else {
    }
    %c0 = arith.constant 0 : index
    %c0_1 = arith.constant 0 : index
    %3 = vector.load %arg4[%c0, %c0_1] : memref<56x512xf32, #tpu.memory_space<vmem>>, vector<56x512xf32>
    %c0_2 = arith.constant 0 : index
    %c0_3 = arith.constant 0 : index
    %4 = vector.load %arg3[%c0_2, %c0_3] : memref<1x512xf32, #tpu.memory_space<vmem>>, vector<1x512xf32>
    %5 = vector.broadcast %4 : vector<1x512xf32> to vector<56x512xf32>
    %6 = arith.mulf %3, %5 : vector<56x512xf32>
    %c0_4 = arith.constant 0 : index
    %c0_5 = arith.constant 0 : index
    %7 = vector.load %arg10[%c0_4, %c0_5] : memref<56x512xf32, #tpu.memory_space<vmem>>, vector<56x512xf32>
    %c0_6 = arith.constant 0 : index
    %c0_7 = arith.constant 0 : index
    %8 = vector.load %arg5[%c0_6, %c0_7] : memref<512x512xf32, #tpu.memory_space<vmem>>, vector<512x512xf32>
    %cst = arith.constant dense<0.000000e+00> : vector<56x512xf32>
    %9 = tpu.matmul %6, %8, %cst {dimension_numbers = #tpu.dot_dimension_numbers<[1], [0], [0], [1], [0, 0, 1, 1], [], []>} : vector<56x512xf32>, vector<512x512xf32>, vector<56x512xf32> -> vector<56x512xf32>
    %10 = arith.addf %7, %9 : vector<56x512xf32>
    %c0_8 = arith.constant 0 : index
    %c0_9 = arith.constant 0 : index
    %11 = vector.load %arg10[%c0_8, %c0_9] : memref<56x512xf32, #tpu.memory_space<vmem>>, vector<56x512xf32>
    tpu.vector_store %arg10[%c0_8, %c0_9], %10 {strides = array<i32>} : memref<56x512xf32, #tpu.memory_space<vmem>>, vector<56x512xf32>,
    %c0_i32_10 = arith.constant 0 : i32
    %12 = arith.cmpi eq, %arg2, %c0_i32_10 : i32
    %13 = arith.extui %12 : i1 to i32
    %c0_i32_11 = arith.constant 0 : i32
    %14 = arith.cmpi ne, %13, %c0_i32_11 : i32
    scf.if %14 {
      %c0_12 = arith.constant 0 : index
      %c0_13 = arith.constant 0 : index
      %15 = vector.load %arg10[%c0_12, %c0_13] : memref<56x512xf32, #tpu.memory_space<vmem>>, vector<56x512xf32>
      %c0_14 = arith.constant 0 : index
      %c0_15 = arith.constant 0 : index
      %16 = vector.load %arg6[%c0_14, %c0_15] : memref<1x512xf32, #tpu.memory_space<vmem>>, vector<1x512xf32>
      %17 = vector.broadcast %16 : vector<1x512xf32> to vector<56x512xf32>
      %18 = arith.mulf %15, %17 : vector<56x512xf32>
      %c0_16 = arith.constant 0 : index
      %c0_17 = arith.constant 0 : index
      %19 = vector.load %arg7[%c0_16, %c0_17] : memref<1x512xf32, #tpu.memory_space<vmem>>, vector<1x512xf32>
      %20 = vector.broadcast %19 : vector<1x512xf32> to vector<56x512xf32>
      %21 = arith.addf %18, %20 : vector<56x512xf32>
      %c0_18 = arith.constant 0 : index
      %c0_19 = arith.constant 0 : index
      %22 = vector.load %arg8[%c0_18, %c0_19] : memref<56x512xf32, #tpu.memory_space<vmem>>, vector<56x512xf32>
      %23 = arith.addf %21, %22 : vector<56x512xf32>
      %cst_20 = arith.constant 0.000000e+00 : f32
      %24 = vector.broadcast %cst_20 : f32 to vector<56x512xf32>
      %25 = arith.maximumf %23, %24 : vector<56x512xf32>
      %c0_21 = arith.constant 0 : index
      %c0_22 = arith.constant 0 : index
      %26 = vector.load %arg9[%c0_21, %c0_22] : memref<56x512xf32, #tpu.memory_space<vmem>>, vector<56x512xf32>
      tpu.vector_store %arg9[%c0_21, %c0_22], %25 {strides = array<i32>} : memref<56x512xf32, #tpu.memory_space<vmem>>, vector<56x512xf32>,
    } else {
    }
    return
  }
  func.func @transform_0(%arg0: i32, %arg1: i32, %arg2: i32) -> (i32, i32) {
    %c0_i32 = arith.constant 0 : i32
    %c0_i32_0 = arith.constant 0 : i32
    return %c0_i32, %arg2 : i32, i32
  }
  func.func @transform_1(%arg0: i32, %arg1: i32, %arg2: i32) -> (i32, i32) {
    %c0_i32 = arith.constant 0 : i32
    return %arg0, %arg2 : i32, i32
  }
  func.func @transform_2(%arg0: i32, %arg1: i32, %arg2: i32) -> (i32, i32) {
    %c0_i32 = arith.constant 0 : i32
    return %arg2, %arg1 : i32, i32
  }
  func.func @transform_3(%arg0: i32, %arg1: i32, %arg2: i32) -> (i32, i32) {
    %c0_i32 = arith.constant 0 : i32
    %c0_i32_0 = arith.constant 0 : i32
    return %c0_i32, %arg1 : i32, i32
  }
  func.func @transform_4(%arg0: i32, %arg1: i32, %arg2: i32) -> (i32, i32) {
    %c0_i32 = arith.constant 0 : i32
    %c0_i32_0 = arith.constant 0 : i32
    return %c0_i32, %arg1 : i32, i32
  }
  func.func @transform_5(%arg0: i32, %arg1: i32, %arg2: i32) -> (i32, i32) {
    %c0_i32 = arith.constant 0 : i32
    return %arg0, %arg1 : i32, i32
  }
  func.func @transform_6(%arg0: i32, %arg1: i32, %arg2: i32) -> (i32, i32) {
    %c0_i32 = arith.constant 0 : i32
    return %arg0, %arg1 : i32, i32
  }
}

</mosaic_0001>

<llo_original>
// kernel: fused_mul_conv_bn_add_relu.1
$region0: #{fused_mul_conv_bn_add_relu.1}
  #allocation0 [shape = 'u32[]', space=smem, size = 0x4, offset = 0x4, fixed_abs, tag = 'smem constant byte address 0x4 - core index']
  #allocation1 [shape = 'u32[144,128]{1,0:T(1,128)}', space=vmem, size = 0x12000, scoped, tag = 'internal scratch']
  #allocation2 [shape = 'f32[56,512]{1,0:T(8,128)}', space=vmem, size = 0x1c000, scoped, tag = 'scratch operand']
  %s0 = inlined_call_operand.hbm [shape: f32[1,512], index: 0, kind: input, shape index: {}]
  %s1 = inlined_call_operand.hbm [shape: f32[56,512], index: 1, kind: input, shape index: {}]
  %s2 = inlined_call_operand.hbm [shape: f32[512,512], index: 2, kind: input, shape index: {}]
  %s3 = inlined_call_operand.hbm [shape: f32[1,512], index: 3, kind: input, shape index: {}]
  %s4 = inlined_call_operand.hbm [shape: f32[1,512], index: 4, kind: input, shape index: {}]
  %s5 = inlined_call_operand.hbm [shape: f32[56,512], index: 5, kind: input, shape index: {}]
  %s6 = inlined_call_operand.hbm [shape: f32[56,512], index: 6, kind: output, shape index: {}]
  %s7 = sld [smem:[#allocation0]]
  $region66: #{fused_mul_conv_bn_add_relu.1} parent=0
    _
  %s9 = ssub.s32 1, %s7
  %s10 = scalar_select 0, %s9, %s7
  $region1: #{fused_mul_conv_bn_add_relu.1} parent=0
    #allocation3 [shape = 'u8[2048]{0}', space=vmem, size = 0x800, scoped, tag = 'input window, operand 0, single buffered']
    #allocation4 [shape = 's32[1]{0}', space=sflag, size = 0x4, scoped, tag = 'scoped memory for fused_mul_conv_bn_add_relu.1']
    #allocation5 [shape = 's32[1]{0}', space=sflag, size = 0x4, scoped, tag = 'scoped memory for fused_mul_conv_bn_add_relu.1']
    #allocation6 [shape = 'u8[114688]{0}', space=vmem, size = 0x1c000, scoped, tag = 'input window, operand 1, single buffered']
    #allocation7 [shape = 's32[1]{0}', space=sflag, size = 0x4, scoped, tag = 'scoped memory for fused_mul_conv_bn_add_relu.1']
    #allocation8 [shape = 'u8[1048576]{0}', space=vmem, size = 0x100000, scoped, tag = 'input window, operand 2, single buffered']
    #allocation9 [shape = 'u8[2048]{0}', space=vmem, size = 0x800, scoped, tag = 'input window, operand 3, single buffered']
    #allocation10 [shape = 's32[1]{0}', space=sflag, size = 0x4, scoped, tag = 'scoped memory for fused_mul_conv_bn_add_relu.1']
    #allocation11 [shape = 'u8[2048]{0}', space=vmem, size = 0x800, scoped, tag = 'input window, operand 4, single buffered']
    #allocation12 [shape = 'u8[114688]{0}', space=vmem, size = 0x1c000, scoped, tag = 'input window, operand 5, single buffered']
    #allocation13 [shape = 's32[1]{0}', space=sflag, size = 0x4, scoped, tag = 'scoped memory for fused_mul_conv_bn_add_relu.1']
    #allocation14 [shape = 'u8[114688]{0}', space=vmem, size = 0x1c000, scoped, tag = 'output window, operand 0, single buffered']
    %11 = vsyncpa [#allocation4], 0
    %12 = vsyncpa [#allocation7], 0
    %13 = vsyncpa [#allocation10], 0
    %14 = vsyncpa [#allocation13], 0
    %15 = vsyncpa [#allocation5], 0
    // Predicated region
    $region2: #{fused_mul_conv_bn_add_relu.1} parent=1 // pred_check
      _
    $region3: #{fused_mul_conv_bn_add_relu.1} parent=1 // pred_check_branch
      %17 = sbr.rel (0) target = $region5
    $region4: #{fused_mul_conv_bn_add_relu.1} parent=1 // pred_region
      %s19 = ssub.s32 64, 64
      %20 = vsyncadd [#allocation4], %s19
      %s22 = sshll.u32 [#allocation3], 4
      %s23 = int_to_ptr.vmem [resolvable:$true] %s22
      %25 = dma.hbm_to_vmem [thread:$0]  %s0, 64, %s23, [#allocation4]
    $region5: #{fused_mul_conv_bn_add_relu.1} parent=1 // pred_fallthru
      _
    // Predicated region
    $region6: #{fused_mul_conv_bn_add_relu.1} parent=1 // pred_check
      _
    $region7: #{fused_mul_conv_bn_add_relu.1} parent=1 // pred_check_branch
      %27 = sbr.rel (0) target = $region9
    $region8: #{fused_mul_conv_bn_add_relu.1} parent=1 // pred_region
      %s29 = ssub.s32 3584, 3584
      %30 = vsyncadd [#allocation7], %s29
      %s31 = sshll.u32 [#allocation6], 4
      %s32 = int_to_ptr.vmem [resolvable:$true] %s31
      %37 = dma.hbm_to_vmem [thread:$0]  %s1, 3584, %s32, [#allocation7], 512, 512, 32
    $region9: #{fused_mul_conv_bn_add_relu.1} parent=1 // pred_fallthru
      _
    // Predicated region
    $region10: #{fused_mul_conv_bn_add_relu.1} parent=1 // pred_check
      _
    $region11: #{fused_mul_conv_bn_add_relu.1} parent=1 // pred_check_branch
      %39 = sbr.rel (0) target = $region13
    $region12: #{fused_mul_conv_bn_add_relu.1} parent=1 // pred_region
      %s41 = ssub.s32 32768, 32768
      %42 = vsyncadd [#allocation7], %s41
      %s43 = sshll.u32 [#allocation8], 4
      %s44 = int_to_ptr.vmem [resolvable:$true] %s43
      %49 = dma.hbm_to_vmem [thread:$0]  %s2, 32768, %s44, [#allocation7], 512, 512, 32
    $region13: #{fused_mul_conv_bn_add_relu.1} parent=1 // pred_fallthru
      _
    // Predicated region
    $region14: #{fused_mul_conv_bn_add_relu.1} parent=1 // pred_check
      _
    $region15: #{fused_mul_conv_bn_add_relu.1} parent=1 // pred_check_branch
      %51 = sbr.rel (0) target = $region17
    $region16: #{fused_mul_conv_bn_add_relu.1} parent=1 // pred_region
      %s53 = ssub.s32 64, 64
      %54 = vsyncadd [#allocation10], %s53
      %s56 = sshll.u32 [#allocation9], 4
      %s57 = int_to_ptr.vmem [resolvable:$true] %s56
      %59 = dma.hbm_to_vmem [thread:$0]  %s3, 64, %s57, [#allocation10]
    $region17: #{fused_mul_conv_bn_add_relu.1} parent=1 // pred_fallthru
      _
    // Predicated region
    $region18: #{fused_mul_conv_bn_add_relu.1} parent=1 // pred_check
      _
    $region19: #{fused_mul_conv_bn_add_relu.1} parent=1 // pred_check_branch
      %61 = sbr.rel (0) target = $region21
    $region20: #{fused_mul_conv_bn_add_relu.1} parent=1 // pred_region
      %s63 = ssub.s32 64, 64
      %64 = vsyncadd [#allocation10], %s63
      %s66 = sshll.u32 [#allocation11], 4
      %s67 = int_to_ptr.vmem [resolvable:$true] %s66
      %69 = dma.hbm_to_vmem [thread:$0]  %s4, 64, %s67, [#allocation10]
    $region21: #{fused_mul_conv_bn_add_relu.1} parent=1 // pred_fallthru
      _
    // Predicated region
    $region22: #{fused_mul_conv_bn_add_relu.1} parent=1 // pred_check
      _
    $region23: #{fused_mul_conv_bn_add_relu.1} parent=1 // pred_check_branch
      %71 = sbr.rel (0) target = $region25
    $region24: #{fused_mul_conv_bn_add_relu.1} parent=1 // pred_region
      %s73 = ssub.s32 3584, 3584
      %74 = vsyncadd [#allocation13], %s73
      %s75 = sshll.u32 [#allocation12], 4
      %s76 = int_to_ptr.vmem [resolvable:$true] %s75
      %81 = dma.hbm_to_vmem [thread:$0]  %s5, 3584, %s76, [#allocation13], 512, 512, 32
    $region25: #{fused_mul_conv_bn_add_relu.1} parent=1 // pred_fallthru
      _
    // Predicated region
    $region26: #{fused_mul_conv_bn_add_relu.1} parent=1 // pred_check
      _
    $region27: #{fused_mul_conv_bn_add_relu.1} parent=1 // pred_check_branch
      %83 = sbr.rel (0) target = $region29
    $region28: #{fused_mul_conv_bn_add_relu.1} parent=1 // pred_region
      %84 = dma.done [#allocation4], 64
    $region29: #{fused_mul_conv_bn_add_relu.1} parent=1 // pred_fallthru
      _
    // Predicated region
    $region30: #{fused_mul_conv_bn_add_relu.1} parent=1 // pred_check
      _
    $region31: #{fused_mul_conv_bn_add_relu.1} parent=1 // pred_check_branch
      %86 = sbr.rel (0) target = $region33
    $region32: #{fused_mul_conv_bn_add_relu.1} parent=1 // pred_region
      %87 = dma.done [#allocation7], 3584
    $region33: #{fused_mul_conv_bn_add_relu.1} parent=1 // pred_fallthru
      _
    // Predicated region
    $region34: #{fused_mul_conv_bn_add_relu.1} parent=1 // pred_check
      _
    $region35: #{fused_mul_conv_bn_add_relu.1} parent=1 // pred_check_branch
      %89 = sbr.rel (0) target = $region37
    $region36: #{fused_mul_conv_bn_add_relu.1} parent=1 // pred_region
      %90 = dma.done [#allocation7], 32768
    $region37: #{fused_mul_conv_bn_add_relu.1} parent=1 // pred_fallthru
      _
    // Predicated region
    $region38: #{fused_mul_conv_bn_add_relu.1} parent=1 // pred_check
      _
    $region39: #{fused_mul_conv_bn_add_relu.1} parent=1 // pred_check_branch
      %92 = sbr.rel (0) target = $region41
    $region40: #{fused_mul_conv_bn_add_relu.1} parent=1 // pred_region
      %93 = dma.done [#allocation10], 64
    $region41: #{fused_mul_conv_bn_add_relu.1} parent=1 // pred_fallthru
      _
    // Predicated region
    $region42: #{fused_mul_conv_bn_add_relu.1} parent=1 // pred_check
      _
    $region43: #{fused_mul_conv_bn_add_relu.1} parent=1 // pred_check_branch
      %95 = sbr.rel (0) target = $region45
    $region44: #{fused_mul_conv_bn_add_relu.1} parent=1 // pred_region
      %96 = dma.done [#allocation10], 64
    $region45: #{fused_mul_conv_bn_add_relu.1} parent=1 // pred_fallthru
      _
    // Predicated region
    $region46: #{fused_mul_conv_bn_add_relu.1} parent=1 // pred_check
      _
    $region47: #{fused_mul_conv_bn_add_relu.1} parent=1 // pred_check_branch
      %98 = sbr.rel (0) target = $region49
    $region48: #{fused_mul_conv_bn_add_relu.1} parent=1 // pred_region
      %99 = dma.done [#allocation13], 3584
    $region49: #{fused_mul_conv_bn_add_relu.1} parent=1 // pred_fallthru
      _
    %p100 = scmp.eq.s32.totalorder 0, 0
    // Predicated region
    $region50: #{fused_mul_conv_bn_add_relu.1} parent=1 // pred_check
      %p101 = pneg %p100
    $region51: #{fused_mul_conv_bn_add_relu.1} parent=1 // pred_check_branch
      %103 = sbr.rel (%p101) target = $region53
    $region52: #{fused_mul_conv_bn_add_relu.1} parent=1 // pred_region
      %104 = vst [vmem:[#allocation2] sm:$0xff] 0.0
      %105 = vst [vmem:[#allocation2 + $0x8] sm:$0xff] 0.0
      %106 = vst [vmem:[#allocation2 + $0x10] sm:$0xff] 0.0
      %107 = vst [vmem:[#allocation2 + $0x18] sm:$0xff] 0.0
      %108 = vst [vmem:[#allocation2 + $0x20] sm:$0xff] 0.0
      %109 = vst [vmem:[#allocation2 + $0x28] sm:$0xff] 0.0
      %110 = vst [vmem:[#allocation2 + $0x30] sm:$0xff] 0.0
      %111 = vst [vmem:[#allocation2 + $0x38] sm:$0xff] 0.0
      %112 = vst [vmem:[#allocation2 + $0x40] sm:$0xff] 0.0
      %113 = vst [vmem:[#allocation2 + $0x48] sm:$0xff] 0.0
      %114 = vst [vmem:[#allocation2 + $0x50] sm:$0xff] 0.0
      %115 = vst [vmem:[#allocation2 + $0x58] sm:$0xff] 0.0
      %116 = vst [vmem:[#allocation2 + $0x60] sm:$0xff] 0.0
      %117 = vst [vmem:[#allocation2 + $0x68] sm:$0xff] 0.0
      %118 = vst [vmem:[#allocation2 + $0x70] sm:$0xff] 0.0
      %119 = vst [vmem:[#allocation2 + $0x78] sm:$0xff] 0.0
      %120 = vst [vmem:[#allocation2 + $0x80] sm:$0xff] 0.0
      %121 = vst [vmem:[#allocation2 + $0x88] sm:$0xff] 0.0
      %122 = vst [vmem:[#allocation2 + $0x90] sm:$0xff] 0.0
      %123 = vst [vmem:[#allocation2 + $0x98] sm:$0xff] 0.0
      %124 = vst [vmem:[#allocation2 + $0xa0] sm:$0xff] 0.0
      %125 = vst [vmem:[#allocation2 + $0xa8] sm:$0xff] 0.0
      %126 = vst [vmem:[#allocation2 + $0xb0] sm:$0xff] 0.0
      %127 = vst [vmem:[#allocation2 + $0xb8] sm:$0xff] 0.0
      %128 = vst [vmem:[#allocation2 + $0xc0] sm:$0xff] 0.0
      %129 = vst [vmem:[#allocation2 + $0xc8] sm:$0xff] 0.0
      %130 = vst [vmem:[#allocation2 + $0xd0] sm:$0xff] 0.0
      %131 = vst [vmem:[#allocation2 + $0xd8] sm:$0xff] 0.0
    $region53: #{fused_mul_conv_bn_add_relu.1} parent=1 // pred_fallthru
      _
    %v132 = vld [vmem:[#allocation6] sm:$0xff]
    %v133 = vld [vmem:[#allocation6 + $0x8] sm:$0xff]
    %v134 = vld [vmem:[#allocation6 + $0x10] sm:$0xff]
    %v135 = vld [vmem:[#allocation6 + $0x18] sm:$0xff]
    %v136 = vld [vmem:[#allocation6 + $0x20] sm:$0xff]
    %v137 = vld [vmem:[#allocation6 + $0x28] sm:$0xff]
    %v138 = vld [vmem:[#allocation6 + $0x30] sm:$0xff]
    %v139 = vld [vmem:[#allocation6 + $0x38] sm:$0xff]
    %v140 = vld [vmem:[#allocation6 + $0x40] sm:$0xff]
    %v141 = vld [vmem:[#allocation6 + $0x48] sm:$0xff]
    %v142 = vld [vmem:[#allocation6 + $0x50] sm:$0xff]
    %v143 = vld [vmem:[#allocation6 + $0x58] sm:$0xff]
    %v144 = vld [vmem:[#allocation6 + $0x60] sm:$0xff]
    %v145 = vld [vmem:[#allocation6 + $0x68] sm:$0xff]
    %v146 = vld [vmem:[#allocation6 + $0x70] sm:$0xff]
    %v147 = vld [vmem:[#allocation6 + $0x78] sm:$0xff]
    %v148 = vld [vmem:[#allocation6 + $0x80] sm:$0xff]
    %v149 = vld [vmem:[#allocation6 + $0x88] sm:$0xff]
    %v150 = vld [vmem:[#allocation6 + $0x90] sm:$0xff]
    %v151 = vld [vmem:[#allocation6 + $0x98] sm:$0xff]
    %v152 = vld [vmem:[#allocation6 + $0xa0] sm:$0xff]
    %v153 = vld [vmem:[#allocation6 + $0xa8] sm:$0xff]
    %v154 = vld [vmem:[#allocation6 + $0xb0] sm:$0xff]
    %v155 = vld [vmem:[#allocation6 + $0xb8] sm:$0xff]
    %v156 = vld [vmem:[#allocation6 + $0xc0] sm:$0xff]
    %v157 = vld [vmem:[#allocation6 + $0xc8] sm:$0xff]
    %v158 = vld [vmem:[#allocation6 + $0xd0] sm:$0xff]
    %v159 = vld [vmem:[#allocation6 + $0xd8] sm:$0xff]
    %v160 = vld [vmem:[#allocation3] sm:$0xf]
    %v162 = vlaneseq
    %v163 = vshrl.u32 %v162, 7
    %v164 = vsub.s32 0, %v163
    %v165 = vrot.slane %v160, %v164
    %v166 = vlaneseq
    %v167 = vshrl.u32 %v166, 7
    %v168 = vsub.s32 1, %v167
    %v169 = vrot.slane %v160, %v168
    %v170 = vlaneseq
    %v171 = vshrl.u32 %v170, 7
    %v172 = vsub.s32 2, %v171
    %v173 = vrot.slane %v160, %v172
    %v174 = vlaneseq
    %v175 = vshrl.u32 %v174, 7
    %v176 = vsub.s32 3, %v175
    %v177 = vrot.slane %v160, %v176
    %v182 = vmul.f32 %v132, %v165
    %v183 = vmul.f32 %v133, %v169
    %v184 = vmul.f32 %v134, %v173
    %v185 = vmul.f32 %v135, %v177
    %v186 = vmul.f32 %v136, %v165
    %v187 = vmul.f32 %v137, %v169
    %v188 = vmul.f32 %v138, %v173
    %v189 = vmul.f32 %v139, %v177
    %v190 = vmul.f32 %v140, %v165
    %v191 = vmul.f32 %v141, %v169
    %v192 = vmul.f32 %v142, %v173
    %v193 = vmul.f32 %v143, %v177
    %v194 = vmul.f32 %v144, %v165
    %v195 = vmul.f32 %v145, %v169
    %v196 = vmul.f32 %v146, %v173
    %v197 = vmul.f32 %v147, %v177
    %v198 = vmul.f32 %v148, %v165
    %v199 = vmul.f32 %v149, %v169
    %v200 = vmul.f32 %v150, %v173
    %v201 = vmul.f32 %v151, %v177
    %v202 = vmul.f32 %v152, %v165
    %v203 = vmul.f32 %v153, %v169
    %v204 = vmul.f32 %v154, %v173
    %v205 = vmul.f32 %v155, %v177
    %v206 = vmul.f32 %v156, %v165
    %v207 = vmul.f32 %v157, %v169
    %v208 = vmul.f32 %v158, %v173
    %v209 = vmul.f32 %v159, %v177
    %v210 = vld [vmem:[#allocation2] sm:$0xff]
    %v211 = vld [vmem:[#allocation2 + $0x8] sm:$0xff]
    %v212 = vld [vmem:[#allocation2 + $0x10] sm:$0xff]
    %v213 = vld [vmem:[#allocation2 + $0x18] sm:$0xff]
    %v214 = vld [vmem:[#allocation2 + $0x20] sm:$0xff]
    %v215 = vld [vmem:[#allocation2 + $0x28] sm:$0xff]
    %v216 = vld [vmem:[#allocation2 + $0x30] sm:$0xff]
    %v217 = vld [vmem:[#allocation2 + $0x38] sm:$0xff]
    %v218 = vld [vmem:[#allocation2 + $0x40] sm:$0xff]
    %v219 = vld [vmem:[#allocation2 + $0x48] sm:$0xff]
    %v220 = vld [vmem:[#allocation2 + $0x50] sm:$0xff]
    %v221 = vld [vmem:[#allocation2 + $0x58] sm:$0xff]
    %v222 = vld [vmem:[#allocation2 + $0x60] sm:$0xff]
    %v223 = vld [vmem:[#allocation2 + $0x68] sm:$0xff]
    %v224 = vld [vmem:[#allocation2 + $0x70] sm:$0xff]
    %v225 = vld [vmem:[#allocation2 + $0x78] sm:$0xff]
    %v226 = vld [vmem:[#allocation2 + $0x80] sm:$0xff]
    %v227 = vld [vmem:[#allocation2 + $0x88] sm:$0xff]
    %v228 = vld [vmem:[#allocation2 + $0x90] sm:$0xff]
    %v229 = vld [vmem:[#allocation2 + $0x98] sm:$0xff]
    %v230 = vld [vmem:[#allocation2 + $0xa0] sm:$0xff]
    %v231 = vld [vmem:[#allocation2 + $0xa8] sm:$0xff]
    %v232 = vld [vmem:[#allocation2 + $0xb0] sm:$0xff]
    %v233 = vld [vmem:[#allocation2 + $0xb8] sm:$0xff]
    %v234 = vld [vmem:[#allocation2 + $0xc0] sm:$0xff]
    %v235 = vld [vmem:[#allocation2 + $0xc8] sm:$0xff]
    %v236 = vld [vmem:[#allocation2 + $0xd0] sm:$0xff]
    %v237 = vld [vmem:[#allocation2 + $0xd8] sm:$0xff]
    %v238 = vld [vmem:[#allocation8] sm:$0xff]
    %v239 = vld [vmem:[#allocation8 + $0x8] sm:$0xff]
    %v240 = vld [vmem:[#allocation8 + $0x10] sm:$0xff]
    %v241 = vld [vmem:[#allocation8 + $0x18] sm:$0xff]
    %v242 = vld [vmem:[#allocation8 + $0x20] sm:$0xff]
    %v243 = vld [vmem:[#allocation8 + $0x28] sm:$0xff]
    %v244 = vld [vmem:[#allocation8 + $0x30] sm:$0xff]
    %v245 = vld [vmem:[#allocation8 + $0x38] sm:$0xff]
    %v246 = vld [vmem:[#allocation8 + $0x40] sm:$0xff]
    %v247 = vld [vmem:[#allocation8 + $0x48] sm:$0xff]
    %v248 = vld [vmem:[#allocation8 + $0x50] sm:$0xff]
    %v249 = vld [vmem:[#allocation8 + $0x58] sm:$0xff]
    %v250 = vld [vmem:[#allocation8 + $0x60] sm:$0xff]
    %v251 = vld [vmem:[#allocation8 + $0x68] sm:$0xff]
    %v252 = vld [vmem:[#allocation8 + $0x70] sm:$0xff]
    %v253 = vld [vmem:[#allocation8 + $0x78] sm:$0xff]
    %v254 = vld [vmem:[#allocation8 + $0x80] sm:$0xff]
    %v255 = vld [vmem:[#allocation8 + $0x88] sm:$0xff]
    %v256 = vld [vmem:[#allocation8 + $0x90] sm:$0xff]
    %v257 = vld [vmem:[#allocation8 + $0x98] sm:$0xff]
    %v258 = vld [vmem:[#allocation8 + $0xa0] sm:$0xff]
    %v259 = vld [vmem:[#allocation8 + $0xa8] sm:$0xff]
    %v260 = vld [vmem:[#allocation8 + $0xb0] sm:$0xff]
    %v261 = vld [vmem:[#allocation8 + $0xb8] sm:$0xff]
    %v262 = vld [vmem:[#allocation8 + $0xc0] sm:$0xff]
    %v263 = vld [vmem:[#allocation8 + $0xc8] sm:$0xff]
    %v264 = vld [vmem:[#allocation8 + $0xd0] sm:$0xff]
    %v265 = vld [vmem:[#allocation8 + $0xd8] sm:$0xff]
    %v266 = vld [vmem:[#allocation8 + $0xe0] sm:$0xff]
    %v267 = vld [vmem:[#allocation8 + $0xe8] sm:$0xff]
    %v268 = vld [vmem:[#allocation8 + $0xf0] sm:$0xff]
    %v269 = vld [vmem:[#allocation8 + $0xf8] sm:$0xff]
    %v270 = vld [vmem:[#allocation8 + $0x100] sm:$0xff]
    %v271 = vld [vmem:[#allocation8 + $0x108] sm:$0xff]
    %v272 = vld [vmem:[#allocation8 + $0x110] sm:$0xff]
    %v273 = vld [vmem:[#allocation8 + $0x118] sm:$0xff]
    %v274 = vld [vmem:[#allocation8 + $0x120] sm:$0xff]
    %v275 = vld [vmem:[#allocation8 + $0x128] sm:$0xff]
    %v276 = vld [vmem:[#allocation8 + $0x130] sm:$0xff]
    %v277 = vld [vmem:[#allocation8 + $0x138] sm:$0xff]
    %v278 = vld [vmem:[#allocation8 + $0x140] sm:$0xff]
    %v279 = vld [vmem:[#allocation8 + $0x148] sm:$0xff]
    %v280 = vld [vmem:[#allocation8 + $0x150] sm:$0xff]
    %v281 = vld [vmem:[#allocation8 + $0x158] sm:$0xff]
    %v282 = vld [vmem:[#allocation8 + $0x160] sm:$0xff]
    %v283 = vld [vmem:[#allocation8 + $0x168] sm:$0xff]
    %v284 = vld [vmem:[#allocation8 + $0x170] sm:$0xff]
    %v285 = vld [vmem:[#allocation8 + $0x178] sm:$0xff]
    %v286 = vld [vmem:[#allocation8 + $0x180] sm:$0xff]
    %v287 = vld [vmem:[#allocation8 + $0x188] sm:$0xff]
    %v288 = vld [vmem:[#allocation8 + $0x190] sm:$0xff]
    %v289 = vld [vmem:[#allocation8 + $0x198] sm:$0xff]
    %v290 = vld [vmem:[#allocation8 + $0x1a0] sm:$0xff]
    %v291 = vld [vmem:[#allocation8 + $0x1a8] sm:$0xff]
    %v292 = vld [vmem:[#allocation8 + $0x1b0] sm:$0xff]
    %v293 = vld [vmem:[#allocation8 + $0x1b8] sm:$0xff]
    %v294 = vld [vmem:[#allocation8 + $0x1c0] sm:$0xff]
    %v295 = vld [vmem:[#allocation8 + $0x1c8] sm:$0xff]
    %v296 = vld [vmem:[#allocation8 + $0x1d0] sm:$0xff]
    %v297 = vld [vmem:[#allocation8 + $0x1d8] sm:$0xff]
    %v298 = vld [vmem:[#allocation8 + $0x1e0] sm:$0xff]
    %v299 = vld [vmem:[#allocation8 + $0x1e8] sm:$0xff]
    %v300 = vld [vmem:[#allocation8 + $0x1f0] sm:$0xff]
    %v301 = vld [vmem:[#allocation8 + $0x1f8] sm:$0xff]
    %v302 = vld [vmem:[#allocation8 + $0x200] sm:$0xff]
    %v303 = vld [vmem:[#allocation8 + $0x208] sm:$0xff]
    %v304 = vld [vmem:[#allocation8 + $0x210] sm:$0xff]
    %v305 = vld [vmem:[#allocation8 + $0x218] sm:$0xff]
    %v306 = vld [vmem:[#allocation8 + $0x220] sm:$0xff]
    %v307 = vld [vmem:[#allocation8 + $0x228] sm:$0xff]
    %v308 = vld [vmem:[#allocation8 + $0x230] sm:$0xff]
    %v309 = vld [vmem:[#allocation8 + $0x238] sm:$0xff]
    %v310 = vld [vmem:[#allocation8 + $0x240] sm:$0xff]
    %v311 = vld [vmem:[#allocation8 + $0x248] sm:$0xff]
    %v312 = vld [vmem:[#allocation8 + $0x250] sm:$0xff]
    %v313 = vld [vmem:[#allocation8 + $0x258] sm:$0xff]
    %v314 = vld [vmem:[#allocation8 + $0x260] sm:$0xff]
    %v315 = vld [vmem:[#allocation8 + $0x268] sm:$0xff]
    %v316 = vld [vmem:[#allocation8 + $0x270] sm:$0xff]
    %v317 = vld [vmem:[#allocation8 + $0x278] sm:$0xff]
    %v318 = vld [vmem:[#allocation8 + $0x280] sm:$0xff]
    %v319 = vld [vmem:[#allocation8 + $0x288] sm:$0xff]
    %v320 = vld [vmem:[#allocation8 + $0x290] sm:$0xff]
    %v321 = vld [vmem:[#allocation8 + $0x298] sm:$0xff]
    %v322 = vld [vmem:[#allocation8 + $0x2a0] sm:$0xff]
    %v323 = vld [vmem:[#allocation8 + $0x2a8] sm:$0xff]
    %v324 = vld [vmem:[#allocation8 + $0x2b0] sm:$0xff]
    %v325 = vld [vmem:[#allocation8 + $0x2b8] sm:$0xff]
    %v326 = vld [vmem:[#allocation8 + $0x2c0] sm:$0xff]
    %v327 = vld [vmem:[#allocation8 + $0x2c8] sm:$0xff]
    %v328 = vld [vmem:[#allocation8 + $0x2d0] sm:$0xff]
    %v329 = vld [vmem:[#allocation8 + $0x2d8] sm:$0xff]
    %v330 = vld [vmem:[#allocation8 + $0x2e0] sm:$0xff]
    %v331 = vld [vmem:[#allocation8 + $0x2e8] sm:$0xff]
    %v332 = vld [vmem:[#allocation8 + $0x2f0] sm:$0xff]
    %v333 = vld [vmem:[#allocation8 + $0x2f8] sm:$0xff]
    %v334 = vld [vmem:[#allocation8 + $0x300] sm:$0xff]
    %v335 = vld [vmem:[#allocation8 + $0x308] sm:$0xff]
    %v336 = vld [vmem:[#allocation8 + $0x310] sm:$0xff]
    %v337 = vld [vmem:[#allocation8 + $0x318] sm:$0xff]
    %v338 = vld [vmem:[#allocation8 + $0x320] sm:$0xff]
    %v339 = vld [vmem:[#allocation8 + $0x328] sm:$0xff]
    %v340 = vld [vmem:[#allocation8 + $0x330] sm:$0xff]
    %v341 = vld [vmem:[#allocation8 + $0x338] sm:$0xff]
    %v342 = vld [vmem:[#allocation8 + $0x340] sm:$0xff]
    %v343 = vld [vmem:[#allocation8 + $0x348] sm:$0xff]
    %v344 = vld [vmem:[#allocation8 + $0x350] sm:$0xff]
    %v345 = vld [vmem:[#allocation8 + $0x358] sm:$0xff]
    %v346 = vld [vmem:[#allocation8 + $0x360] sm:$0xff]
    %v347 = vld [vmem:[#allocation8 + $0x368] sm:$0xff]
    %v348 = vld [vmem:[#allocation8 + $0x370] sm:$0xff]
    %v349 = vld [vmem:[#allocation8 + $0x378] sm:$0xff]
    %v350 = vld [vmem:[#allocation8 + $0x380] sm:$0xff]
    %v351 = vld [vmem:[#allocation8 + $0x388] sm:$0xff]
    %v352 = vld [vmem:[#allocation8 + $0x390] sm:$0xff]
    %v353 = vld [vmem:[#allocation8 + $0x398] sm:$0xff]
    %v354 = vld [vmem:[#allocation8 + $0x3a0] sm:$0xff]
    %v355 = vld [vmem:[#allocation8 + $0x3a8] sm:$0xff]
    %v356 = vld [vmem:[#allocation8 + $0x3b0] sm:$0xff]
    %v357 = vld [vmem:[#allocation8 + $0x3b8] sm:$0xff]
    %v358 = vld [vmem:[#allocation8 + $0x3c0] sm:$0xff]
    %v359 = vld [vmem:[#allocation8 + $0x3c8] sm:$0xff]
    %v360 = vld [vmem:[#allocation8 + $0x3d0] sm:$0xff]
    %v361 = vld [vmem:[#allocation8 + $0x3d8] sm:$0xff]
    %v362 = vld [vmem:[#allocation8 + $0x3e0] sm:$0xff]
    %v363 = vld [vmem:[#allocation8 + $0x3e8] sm:$0xff]
    %v364 = vld [vmem:[#allocation8 + $0x3f0] sm:$0xff]
    %v365 = vld [vmem:[#allocation8 + $0x3f8] sm:$0xff]
    %v366 = vld [vmem:[#allocation8 + $0x400] sm:$0xff]
    %v367 = vld [vmem:[#allocation8 + $0x408] sm:$0xff]
    %v368 = vld [vmem:[#allocation8 + $0x410] sm:$0xff]
    %v369 = vld [vmem:[#allocation8 + $0x418] sm:$0xff]
    %v370 = vld [vmem:[#allocation8 + $0x420] sm:$0xff]
    %v371 = vld [vmem:[#allocation8 + $0x428] sm:$0xff]
    %v372 = vld [vmem:[#allocation8 + $0x430] sm:$0xff]
    %v373 = vld [vmem:[#allocation8 + $0x438] sm:$0xff]
    %v374 = vld [vmem:[#allocation8 + $0x440] sm:$0xff]
    %v375 = vld [vmem:[#allocation8 + $0x448] sm:$0xff]
    %v376 = vld [vmem:[#allocation8 + $0x450] sm:$0xff]
    %v377 = vld [vmem:[#allocation8 + $0x458] sm:$0xff]
    %v378 = vld [vmem:[#allocation8 + $0x460] sm:$0xff]
    %v379 = vld [vmem:[#allocation8 + $0x468] sm:$0xff]
    %v380 = vld [vmem:[#allocation8 + $0x470] sm:$0xff]
    %v381 = vld [vmem:[#allocation8 + $0x478] sm:$0xff]
    %v382 = vld [vmem:[#allocation8 + $0x480] sm:$0xff]
    %v383 = vld [vmem:[#allocation8 + $0x488] sm:$0xff]
    %v384 = vld [vmem:[#allocation8 + $0x490] sm:$0xff]
    %v385 = vld [vmem:[#allocation8 + $0x498] sm:$0xff]
    %v386 = vld [vmem:[#allocation8 + $0x4a0] sm:$0xff]
    %v387 = vld [vmem:[#allocation8 + $0x4a8] sm:$0xff]
    %v388 = vld [vmem:[#allocation8 + $0x4b0] sm:$0xff]
    %v389 = vld [vmem:[#allocation8 + $0x4b8] sm:$0xff]
    %v390 = vld [vmem:[#allocation8 + $0x4c0] sm:$0xff]
    %v391 = vld [vmem:[#allocation8 + $0x4c8] sm:$0xff]
    %v392 = vld [vmem:[#allocation8 + $0x4d0] sm:$0xff]
    %v393 = vld [vmem:[#allocation8 + $0x4d8] sm:$0xff]
    %v394 = vld [vmem:[#allocation8 + $0x4e0] sm:$0xff]
    %v395 = vld [vmem:[#allocation8 + $0x4e8] sm:$0xff]
    %v396 = vld [vmem:[#allocation8 + $0x4f0] sm:$0xff]
    %v397 = vld [vmem:[#allocation8 + $0x4f8] sm:$0xff]
    %v398 = vld [vmem:[#allocation8 + $0x500] sm:$0xff]
    %v399 = vld [vmem:[#allocation8 + $0x508] sm:$0xff]
    %v400 = vld [vmem:[#allocation8 + $0x510] sm:$0xff]
    %v401 = vld [vmem:[#allocation8 + $0x518] sm:$0xff]
    %v402 = vld [vmem:[#allocation8 + $0x520] sm:$0xff]
    %v403 = vld [vmem:[#allocation8 + $0x528] sm:$0xff]
    %v404 = vld [vmem:[#allocation8 + $0x530] sm:$0xff]
    %v405 = vld [vmem:[#allocation8 + $0x538] sm:$0xff]
    %v406 = vld [vmem:[#allocation8 + $0x540] sm:$0xff]
    %v407 = vld [vmem:[#allocation8 + $0x548] sm:$0xff]
    %v408 = vld [vmem:[#allocation8 + $0x550] sm:$0xff]
    %v409 = vld [vmem:[#allocation8 + $0x558] sm:$0xff]
    %v410 = vld [vmem:[#allocation8 + $0x560] sm:$0xff]
    %v411 = vld [vmem:[#allocation8 + $0x568] sm:$0xff]
    %v412 = vld [vmem:[#allocation8 + $0x570] sm:$0xff]
    %v413 = vld [vmem:[#allocation8 + $0x578] sm:$0xff]
    %v414 = vld [vmem:[#allocation8 + $0x580] sm:$0xff]
    %v415 = vld [vmem:[#allocation8 + $0x588] sm:$0xff]
    %v416 = vld [vmem:[#allocation8 + $0x590] sm:$0xff]
    %v417 = vld [vmem:[#allocation8 + $0x598] sm:$0xff]
    %v418 = vld [vmem:[#allocation8 + $0x5a0] sm:$0xff]
    %v419 = vld [vmem:[#allocation8 + $0x5a8] sm:$0xff]
    %v420 = vld [vmem:[#allocation8 + $0x5b0] sm:$0xff]
    %v421 = vld [vmem:[#allocation8 + $0x5b8] sm:$0xff]
    %v422 = vld [vmem:[#allocation8 + $0x5c0] sm:$0xff]
    %v423 = vld [vmem:[#allocation8 + $0x5c8] sm:$0xff]
    %v424 = vld [vmem:[#allocation8 + $0x5d0] sm:$0xff]
    %v425 = vld [vmem:[#allocation8 + $0x5d8] sm:$0xff]
    %v426 = vld [vmem:[#allocation8 + $0x5e0] sm:$0xff]
    %v427 = vld [vmem:[#allocation8 + $0x5e8] sm:$0xff]
    %v428 = vld [vmem:[#allocation8 + $0x5f0] sm:$0xff]
    %v429 = vld [vmem:[#allocation8 + $0x5f8] sm:$0xff]
    %v430 = vld [vmem:[#allocation8 + $0x600] sm:$0xff]
    %v431 = vld [vmem:[#allocation8 + $0x608] sm:$0xff]
    %v432 = vld [vmem:[#allocation8 + $0x610] sm:$0xff]
    %v433 = vld [vmem:[#allocation8 + $0x618] sm:$0xff]
    %v434 = vld [vmem:[#allocation8 + $0x620] sm:$0xff]
    %v435 = vld [vmem:[#allocation8 + $0x628] sm:$0xff]
    %v436 = vld [vmem:[#allocation8 + $0x630] sm:$0xff]
    %v437 = vld [vmem:[#allocation8 + $0x638] sm:$0xff]
    %v438 = vld [vmem:[#allocation8 + $0x640] sm:$0xff]
    %v439 = vld [vmem:[#allocation8 + $0x648] sm:$0xff]
    %v440 = vld [vmem:[#allocation8 + $0x650] sm:$0xff]
    %v441 = vld [vmem:[#allocation8 + $0x658] sm:$0xff]
    %v442 = vld [vmem:[#allocation8 + $0x660] sm:$0xff]
    %v443 = vld [vmem:[#allocation8 + $0x668] sm:$0xff]
    %v444 = vld [vmem:[#allocation8 + $0x670] sm:$0xff]
    %v445 = vld [vmem:[#allocation8 + $0x678] sm:$0xff]
    %v446 = vld [vmem:[#allocation8 + $0x680] sm:$0xff]
    %v447 = vld [vmem:[#allocation8 + $0x688] sm:$0xff]
    %v448 = vld [vmem:[#allocation8 + $0x690] sm:$0xff]
    %v449 = vld [vmem:[#allocation8 + $0x698] sm:$0xff]
    %v450 = vld [vmem:[#allocation8 + $0x6a0] sm:$0xff]
    %v451 = vld [vmem:[#allocation8 + $0x6a8] sm:$0xff]
    %v452 = vld [vmem:[#allocation8 + $0x6b0] sm:$0xff]
    %v453 = vld [vmem:[#allocation8 + $0x6b8] sm:$0xff]
    %v454 = vld [vmem:[#allocation8 + $0x6c0] sm:$0xff]
    %v455 = vld [vmem:[#allocation8 + $0x6c8] sm:$0xff]
    %v456 = vld [vmem:[#allocation8 + $0x6d0] sm:$0xff]
    %v457 = vld [vmem:[#allocation8 + $0x6d8] sm:$0xff]
    %v458 = vld [vmem:[#allocation8 + $0x6e0] sm:$0xff]
    %v459 = vld [vmem:[#allocation8 + $0x6e8] sm:$0xff]
    %v460 = vld [vmem:[#allocation8 + $0x6f0] sm:$0xff]
    %v461 = vld [vmem:[#allocation8 + $0x6f8] sm:$0xff]
    %v462 = vld [vmem:[#allocation8 + $0x700] sm:$0xff]
    %v463 = vld [vmem:[#allocation8 + $0x708] sm:$0xff]
    %v464 = vld [vmem:[#allocation8 + $0x710] sm:$0xff]
    %v465 = vld [vmem:[#allocation8 + $0x718] sm:$0xff]
    %v466 = vld [vmem:[#allocation8 + $0x720] sm:$0xff]
    %v467 = vld [vmem:[#allocation8 + $0x728] sm:$0xff]
    %v468 = vld [vmem:[#allocation8 + $0x730] sm:$0xff]
    %v469 = vld [vmem:[#allocation8 + $0x738] sm:$0xff]
    %v470 = vld [vmem:[#allocation8 + $0x740] sm:$0xff]
    %v471 = vld [vmem:[#allocation8 + $0x748] sm:$0xff]
    %v472 = vld [vmem:[#allocation8 + $0x750] sm:$0xff]
    %v473 = vld [vmem:[#allocation8 + $0x758] sm:$0xff]
    %v474 = vld [vmem:[#allocation8 + $0x760] sm:$0xff]
    %v475 = vld [vmem:[#allocation8 + $0x768] sm:$0xff]
    %v476 = vld [vmem:[#allocation8 + $0x770] sm:$0xff]
    %v477 = vld [vmem:[#allocation8 + $0x778] sm:$0xff]
    %v478 = vld [vmem:[#allocation8 + $0x780] sm:$0xff]
    %v479 = vld [vmem:[#allocation8 + $0x788] sm:$0xff]
    %v480 = vld [vmem:[#allocation8 + $0x790] sm:$0xff]
    %v481 = vld [vmem:[#allocation8 + $0x798] sm:$0xff]
    %v482 = vld [vmem:[#allocation8 + $0x7a0] sm:$0xff]
    %v483 = vld [vmem:[#allocation8 + $0x7a8] sm:$0xff]
    %v484 = vld [vmem:[#allocation8 + $0x7b0] sm:$0xff]
    %v485 = vld [vmem:[#allocation8 + $0x7b8] sm:$0xff]
    %v486 = vld [vmem:[#allocation8 + $0x7c0] sm:$0xff]
    %v487 = vld [vmem:[#allocation8 + $0x7c8] sm:$0xff]
    %v488 = vld [vmem:[#allocation8 + $0x7d0] sm:$0xff]
    %v489 = vld [vmem:[#allocation8 + $0x7d8] sm:$0xff]
    %v490 = vld [vmem:[#allocation8 + $0x7e0] sm:$0xff]
    %v491 = vld [vmem:[#allocation8 + $0x7e8] sm:$0xff]
    %v492 = vld [vmem:[#allocation8 + $0x7f0] sm:$0xff]
    %v493 = vld [vmem:[#allocation8 + $0x7f8] sm:$0xff]
    %494 = vmatprep.subr.mxu0 %v239
    %495 = vmatpush1.msra.mxu0 %v238
    %496 = vmatprep.subr.mxu0 %v243
    %497 = vmatpush1.msra.mxu0 %v242
    %498 = vmatprep.subr.mxu0 %v247
    %499 = vmatpush1.msra.mxu0 %v246
    %500 = vmatprep.subr.mxu0 %v251
    %501 = vmatpush1.msra.mxu0 %v250
    %502 = vmatprep.subr.mxu0 %v255
    %503 = vmatpush1.msra.mxu0 %v254
    %504 = vmatprep.subr.mxu0 %v259
    %505 = vmatpush1.msra.mxu0 %v258
    %506 = vmatprep.subr.mxu0 %v263
    %507 = vmatpush1.msra.mxu0 %v262
    %508 = vmatprep.subr.mxu0 %v267
    %509 = vmatpush1.msra.mxu0 %v266
    %510 = vmatprep.subr.mxu0 %v271
    %511 = vmatpush1.msra.mxu0 %v270
    %512 = vmatprep.subr.mxu0 %v275
    %513 = vmatpush1.msra.mxu0 %v274
    %514 = vmatprep.subr.mxu0 %v279
    %515 = vmatpush1.msra.mxu0 %v278
    %516 = vmatprep.subr.mxu0 %v283
    %517 = vmatpush1.msra.mxu0 %v282
    %518 = vmatprep.subr.mxu0 %v287
    %519 = vmatpush1.msra.mxu0 %v286
    %520 = vmatprep.subr.mxu0 %v291
    %521 = vmatpush1.msra.mxu0 %v290
    %522 = vmatprep.subr.mxu0 %v295
    %523 = vmatpush1.msra.mxu0 %v294
    %524 = vmatprep.subr.mxu0 %v299
    %525 = vmatpush1.msra.mxu0 %v298
    %526 = vmatprep.subr.mxu0 %v303
    %527 = vmatpush1.msra.mxu0 %v302
    %528 = vmatprep.subr.mxu0 %v307
    %529 = vmatpush1.msra.mxu0 %v306
    %530 = vmatprep.subr.mxu0 %v311
    %531 = vmatpush1.msra.mxu0 %v310
    %532 = vmatprep.subr.mxu0 %v315
    %533 = vmatpush1.msra.mxu0 %v314
    %534 = vmatprep.subr.mxu0 %v319
    %535 = vmatpush1.msra.mxu0 %v318
    %536 = vmatprep.subr.mxu0 %v323
    %537 = vmatpush1.msra.mxu0 %v322
    %538 = vmatprep.subr.mxu0 %v327
    %539 = vmatpush1.msra.mxu0 %v326
    %540 = vmatprep.subr.mxu0 %v331
    %541 = vmatpush1.msra.mxu0 %v330
    %542 = vmatprep.subr.mxu0 %v335
    %543 = vmatpush1.msra.mxu0 %v334
    %544 = vmatprep.subr.mxu0 %v339
    %545 = vmatpush1.msra.mxu0 %v338
    %546 = vmatprep.subr.mxu0 %v343
    %547 = vmatpush1.msra.mxu0 %v342
    %548 = vmatprep.subr.mxu0 %v347
    %549 = vmatpush1.msra.mxu0 %v346
    %550 = vmatprep.subr.mxu0 %v351
    %551 = vmatpush1.msra.mxu0 %v350
    %552 = vmatprep.subr.mxu0 %v355
    %553 = vmatpush1.msra.mxu0 %v354
    %554 = vmatprep.subr.mxu0 %v359
    %555 = vmatpush1.msra.mxu0 %v358
    %556 = vmatprep.subr.mxu0 %v363
    %557 = vmatpush1.msra.mxu0 %v362
    %558 = vmatprep.mubr.f32.mxu0 %v183
    %559 = vmatmul.mubr.f32.gmra.mrb[0].mxu0 %v182
    %v560 = vpop.f32.mrb[0].mxu0
    %v561 = vadd.f32 0.0, %v560
    %v562 = vpop.f32.mrb[0].mxu0
    %v563 = vadd.f32 0.0, %v562
    %564 = vmatprep.mubr.f32.mxu0 %v187
    %565 = vmatmul.mubr.f32.gmra.mrb[0].mxu0 %v186
    %v566 = vpop.f32.mrb[0].mxu0
    %v567 = vadd.f32 0.0, %v566
    %v568 = vpop.f32.mrb[0].mxu0
    %v569 = vadd.f32 0.0, %v568
    %570 = vmatprep.mubr.f32.mxu0 %v191
    %571 = vmatmul.mubr.f32.gmra.mrb[0].mxu0 %v190
    %v572 = vpop.f32.mrb[0].mxu0
    %v573 = vadd.f32 0.0, %v572
    %v574 = vpop.f32.mrb[0].mxu0
    %v575 = vadd.f32 0.0, %v574
    %576 = vmatprep.mubr.f32.mxu0 %v195
    %577 = vmatmul.mubr.f32.gmra.mrb[0].mxu0 %v194
    %v578 = vpop.f32.mrb[0].mxu0
    %v579 = vadd.f32 0.0, %v578
    %v580 = vpop.f32.mrb[0].mxu0
    %v581 = vadd.f32 0.0, %v580
    %582 = vmatprep.mubr.f32.mxu0 %v199
    %583 = vmatmul.mubr.f32.gmra.mrb[0].mxu0 %v198
    %v584 = vpop.f32.mrb[0].mxu0
    %v585 = vadd.f32 0.0, %v584
    %v586 = vpop.f32.mrb[0].mxu0
    %v587 = vadd.f32 0.0, %v586
    %588 = vmatprep.mubr.f32.mxu0 %v203
    %589 = vmatmul.mubr.f32.gmra.mrb[0].mxu0 %v202
    %v590 = vpop.f32.mrb[0].mxu0
    %v591 = vadd.f32 0.0, %v590
    %v592 = vpop.f32.mrb[0].mxu0
    %v593 = vadd.f32 0.0, %v592
    %594 = vmatprep.mubr.f32.mxu0 %v207
    %595 = vmatmul.mubr.f32.gmra.mrb[0].mxu0 %v206
    %v596 = vpop.f32.mrb[0].mxu0
    %v597 = vadd.f32 0.0, %v596
    %v598 = vpop.f32.mrb[0].mxu0
    %v599 = vadd.f32 0.0, %v598
    %600 = vdwg.mxu0
    %601 = vmatprep.subr.mxu0 %v367
    %602 = vmatpush1.msra.mxu0 %v366
    %603 = vmatprep.subr.mxu0 %v371
    %604 = vmatpush1.msra.mxu0 %v370
    %605 = vmatprep.subr.mxu0 %v375
    %606 = vmatpush1.msra.mxu0 %v374
    %607 = vmatprep.subr.mxu0 %v379
    %608 = vmatpush1.msra.mxu0 %v378
    %609 = vmatprep.subr.mxu0 %v383
    %610 = vmatpush1.msra.mxu0 %v382
    %611 = vmatprep.subr.mxu0 %v387
    %612 = vmatpush1.msra.mxu0 %v386
    %613 = vmatprep.subr.mxu0 %v391
    %614 = vmatpush1.msra.mxu0 %v390
    %615 = vmatprep.subr.mxu0 %v395
    %616 = vmatpush1.msra.mxu0 %v394
    %617 = vmatprep.subr.mxu0 %v399
    %618 = vmatpush1.msra.mxu0 %v398
    %619 = vmatprep.subr.mxu0 %v403
    %620 = vmatpush1.msra.mxu0 %v402
    %621 = vmatprep.subr.mxu0 %v407
    %622 = vmatpush1.msra.mxu0 %v406
    %623 = vmatprep.subr.mxu0 %v411
    %624 = vmatpush1.msra.mxu0 %v410
    %625 = vmatprep.subr.mxu0 %v415
    %626 = vmatpush1.msra.mxu0 %v414
    %627 = vmatprep.subr.mxu0 %v419
    %628 = vmatpush1.msra.mxu0 %v418
    %629 = vmatprep.subr.mxu0 %v423
    %630 = vmatpush1.msra.mxu0 %v422
    %631 = vmatprep.subr.mxu0 %v427
    %632 = vmatpush1.msra.mxu0 %v426
    %633 = vmatprep.subr.mxu0 %v431
    %634 = vmatpush1.msra.mxu0 %v430
    %635 = vmatprep.subr.mxu0 %v435
    %636 = vmatpush1.msra.mxu0 %v434
    %637 = vmatprep.subr.mxu0 %v439
    %638 = vmatpush1.msra.mxu0 %v438
    %639 = vmatprep.subr.mxu0 %v443
    %640 = vmatpush1.msra.mxu0 %v442
    %641 = vmatprep.subr.mxu0 %v447
    %642 = vmatpush1.msra.mxu0 %v446
    %643 = vmatprep.subr.mxu0 %v451
    %644 = vmatpush1.msra.mxu0 %v450
    %645 = vmatprep.subr.mxu0 %v455
    %646 = vmatpush1.msra.mxu0 %v454
    %647 = vmatprep.subr.mxu0 %v459
    %648 = vmatpush1.msra.mxu0 %v458
    %649 = vmatprep.subr.mxu0 %v463
    %650 = vmatpush1.msra.mxu0 %v462
    %651 = vmatprep.subr.mxu0 %v467
    %652 = vmatpush1.msra.mxu0 %v466
    %653 = vmatprep.subr.mxu0 %v471
    %654 = vmatpush1.msra.mxu0 %v470
    %655 = vmatprep.subr.mxu0 %v475
    %656 = vmatpush1.msra.mxu0 %v474
    %657 = vmatprep.subr.mxu0 %v479
    %658 = vmatpush1.msra.mxu0 %v478
    %659 = vmatprep.subr.mxu0 %v483
    %660 = vmatpush1.msra.mxu0 %v482
    %661 = vmatprep.subr.mxu0 %v487
    %662 = vmatpush1.msra.mxu0 %v486
    %663 = vmatprep.subr.mxu0 %v491
    %664 = vmatpush1.msra.mxu0 %v490
    %665 = vmatprep.mubr.f32.mxu0 %v185
    %666 = vmatmul.mubr.f32.gmra.mrb[0].mxu0 %v184
    %v667 = vpop.f32.mrb[0].mxu0
    %v668 = vadd.f32 %v561, %v667
    %v669 = vpop.f32.mrb[0].mxu0
    %v670 = vadd.f32 %v563, %v669
    %671 = vmatprep.mubr.f32.mxu0 %v189
    %672 = vmatmul.mubr.f32.gmra.mrb[0].mxu0 %v188
    %v673 = vpop.f32.mrb[0].mxu0
    %v674 = vadd.f32 %v567, %v673
    %v675 = vpop.f32.mrb[0].mxu0
    %v676 = vadd.f32 %v569, %v675
    %677 = vmatprep.mubr.f32.mxu0 %v193
    %678 = vmatmul.mubr.f32.gmra.mrb[0].mxu0 %v192
    %v679 = vpop.f32.mrb[0].mxu0
    %v680 = vadd.f32 %v573, %v679
    %v681 = vpop.f32.mrb[0].mxu0
    %v682 = vadd.f32 %v575, %v681
    %683 = vmatprep.mubr.f32.mxu0 %v197
    %684 = vmatmul.mubr.f32.gmra.mrb[0].mxu0 %v196
    %v685 = vpop.f32.mrb[0].mxu0
    %v686 = vadd.f32 %v579, %v685
    %v687 = vpop.f32.mrb[0].mxu0
    %v688 = vadd.f32 %v581, %v687
    %689 = vmatprep.mubr.f32.mxu0 %v201
    %690 = vmatmul.mubr.f32.gmra.mrb[0].mxu0 %v200
    %v691 = vpop.f32.mrb[0].mxu0
    %v692 = vadd.f32 %v585, %v691
    %v693 = vpop.f32.mrb[0].mxu0
    %v694 = vadd.f32 %v587, %v693
    %695 = vmatprep.mubr.f32.mxu0 %v205
    %696 = vmatmul.mubr.f32.gmra.mrb[0].mxu0 %v204
    %v697 = vpop.f32.mrb[0].mxu0
    %v698 = vadd.f32 %v591, %v697
    %v699 = vpop.f32.mrb[0].mxu0
    %v700 = vadd.f32 %v593, %v699
    %701 = vmatprep.mubr.f32.mxu0 %v209
    %702 = vmatmul.mubr.f32.gmra.mrb[0].mxu0 %v208
    %v703 = vpop.f32.mrb[0].mxu0
    %v704 = vadd.f32 %v597, %v703
    %v705 = vpop.f32.mrb[0].mxu0
    %v706 = vadd.f32 %v599, %v705
    %707 = vdwg.mxu0
    %708 = vmatprep.subr.mxu0 %v241
    %709 = vmatpush1.msra.mxu0 %v240
    %710 = vmatprep.subr.mxu0 %v245
    %711 = vmatpush1.msra.mxu0 %v244
    %712 = vmatprep.subr.mxu0 %v249
    %713 = vmatpush1.msra.mxu0 %v248
    %714 = vmatprep.subr.mxu0 %v253
    %715 = vmatpush1.msra.mxu0 %v252
    %716 = vmatprep.subr.mxu0 %v257
    %717 = vmatpush1.msra.mxu0 %v256
    %718 = vmatprep.subr.mxu0 %v261
    %719 = vmatpush1.msra.mxu0 %v260
    %720 = vmatprep.subr.mxu0 %v265
    %721 = vmatpush1.msra.mxu0 %v264
    %722 = vmatprep.subr.mxu0 %v269
    %723 = vmatpush1.msra.mxu0 %v268
    %724 = vmatprep.subr.mxu0 %v273
    %725 = vmatpush1.msra.mxu0 %v272
    %726 = vmatprep.subr.mxu0 %v277
    %727 = vmatpush1.msra.mxu0 %v276
    %728 = vmatprep.subr.mxu0 %v281
    %729 = vmatpush1.msra.mxu0 %v280
    %730 = vmatprep.subr.mxu0 %v285
    %731 = vmatpush1.msra.mxu0 %v284
    %732 = vmatprep.subr.mxu0 %v289
    %733 = vmatpush1.msra.mxu0 %v288
    %734 = vmatprep.subr.mxu0 %v293
    %735 = vmatpush1.msra.mxu0 %v292
    %736 = vmatprep.subr.mxu0 %v297
    %737 = vmatpush1.msra.mxu0 %v296
    %738 = vmatprep.subr.mxu0 %v301
    %739 = vmatpush1.msra.mxu0 %v300
    %740 = vmatprep.subr.mxu0 %v305
    %741 = vmatpush1.msra.mxu0 %v304
    %742 = vmatprep.subr.mxu0 %v309
    %743 = vmatpush1.msra.mxu0 %v308
    %744 = vmatprep.subr.mxu0 %v313
    %745 = vmatpush1.msra.mxu0 %v312
    %746 = vmatprep.subr.mxu0 %v317
    %747 = vmatpush1.msra.mxu0 %v316
    %748 = vmatprep.subr.mxu0 %v321
    %749 = vmatpush1.msra.mxu0 %v320
    %750 = vmatprep.subr.mxu0 %v325
    %751 = vmatpush1.msra.mxu0 %v324
    %752 = vmatprep.subr.mxu0 %v329
    %753 = vmatpush1.msra.mxu0 %v328
    %754 = vmatprep.subr.mxu0 %v333
    %755 = vmatpush1.msra.mxu0 %v332
    %756 = vmatprep.subr.mxu0 %v337
    %757 = vmatpush1.msra.mxu0 %v336
    %758 = vmatprep.subr.mxu0 %v341
    %759 = vmatpush1.msra.mxu0 %v340
    %760 = vmatprep.subr.mxu0 %v345
    %761 = vmatpush1.msra.mxu0 %v344
    %762 = vmatprep.subr.mxu0 %v349
    %763 = vmatpush1.msra.mxu0 %v348
    %764 = vmatprep.subr.mxu0 %v353
    %765 = vmatpush1.msra.mxu0 %v352
    %766 = vmatprep.subr.mxu0 %v357
    %767 = vmatpush1.msra.mxu0 %v356
    %768 = vmatprep.subr.mxu0 %v361
    %769 = vmatpush1.msra.mxu0 %v360
    %770 = vmatprep.subr.mxu0 %v365
    %771 = vmatpush1.msra.mxu0 %v364
    %772 = vmatprep.mubr.f32.mxu0 %v183
    %773 = vmatmul.mubr.f32.gmra.mrb[0].mxu0 %v182
    %v774 = vpop.f32.mrb[0].mxu0
    %v775 = vadd.f32 0.0, %v774
    %v776 = vpop.f32.mrb[0].mxu0
    %v777 = vadd.f32 0.0, %v776
    %778 = vmatprep.mubr.f32.mxu0 %v187
    %779 = vmatmul.mubr.f32.gmra.mrb[0].mxu0 %v186
    %v780 = vpop.f32.mrb[0].mxu0
    %v781 = vadd.f32 0.0, %v780
    %v782 = vpop.f32.mrb[0].mxu0
    %v783 = vadd.f32 0.0, %v782
    %784 = vmatprep.mubr.f32.mxu0 %v191
    %785 = vmatmul.mubr.f32.gmra.mrb[0].mxu0 %v190
    %v786 = vpop.f32.mrb[0].mxu0
    %v787 = vadd.f32 0.0, %v786
    %v788 = vpop.f32.mrb[0].mxu0
    %v789 = vadd.f32 0.0, %v788
    %790 = vmatprep.mubr.f32.mxu0 %v195
    %791 = vmatmul.mubr.f32.gmra.mrb[0].mxu0 %v194
    %v792 = vpop.f32.mrb[0].mxu0
    %v793 = vadd.f32 0.0, %v792
    %v794 = vpop.f32.mrb[0].mxu0
    %v795 = vadd.f32 0.0, %v794
    %796 = vmatprep.mubr.f32.mxu0 %v199
    %797 = vmatmul.mubr.f32.gmra.mrb[0].mxu0 %v198
    %v798 = vpop.f32.mrb[0].mxu0
    %v799 = vadd.f32 0.0, %v798
    %v800 = vpop.f32.mrb[0].mxu0
    %v801 = vadd.f32 0.0, %v800
    %802 = vmatprep.mubr.f32.mxu0 %v203
    %803 = vmatmul.mubr.f32.gmra.mrb[0].mxu0 %v202
    %v804 = vpop.f32.mrb[0].mxu0
    %v805 = vadd.f32 0.0, %v804
    %v806 = vpop.f32.mrb[0].mxu0
    %v807 = vadd.f32 0.0, %v806
    %808 = vmatprep.mubr.f32.mxu0 %v207
    %809 = vmatmul.mubr.f32.gmra.mrb[0].mxu0 %v206
    %v810 = vpop.f32.mrb[0].mxu0
    %v811 = vadd.f32 0.0, %v810
    %v812 = vpop.f32.mrb[0].mxu0
    %v813 = vadd.f32 0.0, %v812
    %814 = vdwg.mxu0
    %815 = vmatprep.subr.mxu0 %v369
    %816 = vmatpush1.msra.mxu0 %v368
    %817 = vmatprep.subr.mxu0 %v373
    %818 = vmatpush1.msra.mxu0 %v372
    %819 = vmatprep.subr.mxu0 %v377
    %820 = vmatpush1.msra.mxu0 %v376
    %821 = vmatprep.subr.mxu0 %v381
    %822 = vmatpush1.msra.mxu0 %v380
    %823 = vmatprep.subr.mxu0 %v385
    %824 = vmatpush1.msra.mxu0 %v384
    %825 = vmatprep.subr.mxu0 %v389
    %826 = vmatpush1.msra.mxu0 %v388
    %827 = vmatprep.subr.mxu0 %v393
    %828 = vmatpush1.msra.mxu0 %v392
    %829 = vmatprep.subr.mxu0 %v397
    %830 = vmatpush1.msra.mxu0 %v396
    %831 = vmatprep.subr.mxu0 %v401
    %832 = vmatpush1.msra.mxu0 %v400
    %833 = vmatprep.subr.mxu0 %v405
    %834 = vmatpush1.msra.mxu0 %v404
    %835 = vmatprep.subr.mxu0 %v409
    %836 = vmatpush1.msra.mxu0 %v408
    %837 = vmatprep.subr.mxu0 %v413
    %838 = vmatpush1.msra.mxu0 %v412
    %839 = vmatprep.subr.mxu0 %v417
    %840 = vmatpush1.msra.mxu0 %v416
    %841 = vmatprep.subr.mxu0 %v421
    %842 = vmatpush1.msra.mxu0 %v420
    %843 = vmatprep.subr.mxu0 %v425
    %844 = vmatpush1.msra.mxu0 %v424
    %845 = vmatprep.subr.mxu0 %v429
    %846 = vmatpush1.msra.mxu0 %v428
    %847 = vmatprep.subr.mxu0 %v433
    %848 = vmatpush1.msra.mxu0 %v432
    %849 = vmatprep.subr.mxu0 %v437
    %850 = vmatpush1.msra.mxu0 %v436
    %851 = vmatprep.subr.mxu0 %v441
    %852 = vmatpush1.msra.mxu0 %v440
    %853 = vmatprep.subr.mxu0 %v445
    %854 = vmatpush1.msra.mxu0 %v444
    %855 = vmatprep.subr.mxu0 %v449
    %856 = vmatpush1.msra.mxu0 %v448
    %857 = vmatprep.subr.mxu0 %v453
    %858 = vmatpush1.msra.mxu0 %v452
    %859 = vmatprep.subr.mxu0 %v457
    %860 = vmatpush1.msra.mxu0 %v456
    %861 = vmatprep.subr.mxu0 %v461
    %862 = vmatpush1.msra.mxu0 %v460
    %863 = vmatprep.subr.mxu0 %v465
    %864 = vmatpush1.msra.mxu0 %v464
    %865 = vmatprep.subr.mxu0 %v469
    %866 = vmatpush1.msra.mxu0 %v468
    %867 = vmatprep.subr.mxu0 %v473
    %868 = vmatpush1.msra.mxu0 %v472
    %869 = vmatprep.subr.mxu0 %v477
    %870 = vmatpush1.msra.mxu0 %v476
    %871 = vmatprep.subr.mxu0 %v481
    %872 = vmatpush1.msra.mxu0 %v480
    %873 = vmatprep.subr.mxu0 %v485
    %874 = vmatpush1.msra.mxu0 %v484
    %875 = vmatprep.subr.mxu0 %v489
    %876 = vmatpush1.msra.mxu0 %v488
    %877 = vmatprep.subr.mxu0 %v493
    %878 = vmatpush1.msra.mxu0 %v492
    %879 = vmatprep.mubr.f32.mxu0 %v185
    %880 = vmatmul.mubr.f32.gmra.mrb[0].mxu0 %v184
    %v881 = vpop.f32.mrb[0].mxu0
    %v882 = vadd.f32 %v775, %v881
    %v883 = vpop.f32.mrb[0].mxu0
    %v884 = vadd.f32 %v777, %v883
    %885 = vmatprep.mubr.f32.mxu0 %v189
    %886 = vmatmul.mubr.f32.gmra.mrb[0].mxu0 %v188
    %v887 = vpop.f32.mrb[0].mxu0
    %v888 = vadd.f32 %v781, %v887
    %v889 = vpop.f32.mrb[0].mxu0
    %v890 = vadd.f32 %v783, %v889
    %891 = vmatprep.mubr.f32.mxu0 %v193
    %892 = vmatmul.mubr.f32.gmra.mrb[0].mxu0 %v192
    %v893 = vpop.f32.mrb[0].mxu0
    %v894 = vadd.f32 %v787, %v893
    %v895 = vpop.f32.mrb[0].mxu0
    %v896 = vadd.f32 %v789, %v895
    %897 = vmatprep.mubr.f32.mxu0 %v197
    %898 = vmatmul.mubr.f32.gmra.mrb[0].mxu0 %v196
    %v899 = vpop.f32.mrb[0].mxu0
    %v900 = vadd.f32 %v793, %v899
    %v901 = vpop.f32.mrb[0].mxu0
    %v902 = vadd.f32 %v795, %v901
    %903 = vmatprep.mubr.f32.mxu0 %v201
    %904 = vmatmul.mubr.f32.gmra.mrb[0].mxu0 %v200
    %v905 = vpop.f32.mrb[0].mxu0
    %v906 = vadd.f32 %v799, %v905
    %v907 = vpop.f32.mrb[0].mxu0
    %v908 = vadd.f32 %v801, %v907
    %909 = vmatprep.mubr.f32.mxu0 %v205
    %910 = vmatmul.mubr.f32.gmra.mrb[0].mxu0 %v204
    %v911 = vpop.f32.mrb[0].mxu0
    %v912 = vadd.f32 %v805, %v911
    %v913 = vpop.f32.mrb[0].mxu0
    %v914 = vadd.f32 %v807, %v913
    %915 = vmatprep.mubr.f32.mxu0 %v209
    %916 = vmatmul.mubr.f32.gmra.mrb[0].mxu0 %v208
    %v917 = vpop.f32.mrb[0].mxu0
    %v918 = vadd.f32 %v811, %v917
    %v919 = vpop.f32.mrb[0].mxu0
    %v920 = vadd.f32 %v813, %v919
    %921 = vdwg.mxu0
    %v922 = vadd.f32 %v210, %v668
    %v923 = vadd.f32 %v211, %v670
    %v924 = vadd.f32 %v212, %v882
    %v925 = vadd.f32 %v213, %v884
    %v926 = vadd.f32 %v214, %v674
    %v927 = vadd.f32 %v215, %v676
    %v928 = vadd.f32 %v216, %v888
    %v929 = vadd.f32 %v217, %v890
    %v930 = vadd.f32 %v218, %v680
    %v931 = vadd.f32 %v219, %v682
    %v932 = vadd.f32 %v220, %v894
    %v933 = vadd.f32 %v221, %v896
    %v934 = vadd.f32 %v222, %v686
    %v935 = vadd.f32 %v223, %v688
    %v936 = vadd.f32 %v224, %v900
    %v937 = vadd.f32 %v225, %v902
    %v938 = vadd.f32 %v226, %v692
    %v939 = vadd.f32 %v227, %v694
    %v940 = vadd.f32 %v228, %v906
    %v941 = vadd.f32 %v229, %v908
    %v942 = vadd.f32 %v230, %v698
    %v943 = vadd.f32 %v231, %v700
    %v944 = vadd.f32 %v232, %v912
    %v945 = vadd.f32 %v233, %v914
    %v946 = vadd.f32 %v234, %v704
    %v947 = vadd.f32 %v235, %v706
    %v948 = vadd.f32 %v236, %v918
    %v949 = vadd.f32 %v237, %v920
    %950 = vst [vmem:[#allocation2] sm:$0xff] %v922
    %951 = vst [vmem:[#allocation2 + $0x8] sm:$0xff] %v923
    %952 = vst [vmem:[#allocation2 + $0x10] sm:$0xff] %v924
    %953 = vst [vmem:[#allocation2 + $0x18] sm:$0xff] %v925
    %954 = vst [vmem:[#allocation2 + $0x20] sm:$0xff] %v926
    %955 = vst [vmem:[#allocation2 + $0x28] sm:$0xff] %v927
    %956 = vst [vmem:[#allocation2 + $0x30] sm:$0xff] %v928
    %957 = vst [vmem:[#allocation2 + $0x38] sm:$0xff] %v929
    %958 = vst [vmem:[#allocation2 + $0x40] sm:$0xff] %v930
    %959 = vst [vmem:[#allocation2 + $0x48] sm:$0xff] %v931
    %960 = vst [vmem:[#allocation2 + $0x50] sm:$0xff] %v932
    %961 = vst [vmem:[#allocation2 + $0x58] sm:$0xff] %v933
    %962 = vst [vmem:[#allocation2 + $0x60] sm:$0xff] %v934
    %963 = vst [vmem:[#allocation2 + $0x68] sm:$0xff] %v935
    %964 = vst [vmem:[#allocation2 + $0x70] sm:$0xff] %v936
    %965 = vst [vmem:[#allocation2 + $0x78] sm:$0xff] %v937
    %966 = vst [vmem:[#allocation2 + $0x80] sm:$0xff] %v938
    %967 = vst [vmem:[#allocation2 + $0x88] sm:$0xff] %v939
    %968 = vst [vmem:[#allocation2 + $0x90] sm:$0xff] %v940
    %969 = vst [vmem:[#allocation2 + $0x98] sm:$0xff] %v941
    %970 = vst [vmem:[#allocation2 + $0xa0] sm:$0xff] %v942
    %971 = vst [vmem:[#allocation2 + $0xa8] sm:$0xff] %v943
    %972 = vst [vmem:[#allocation2 + $0xb0] sm:$0xff] %v944
    %973 = vst [vmem:[#allocation2 + $0xb8] sm:$0xff] %v945
    %974 = vst [vmem:[#allocation2 + $0xc0] sm:$0xff] %v946
    %975 = vst [vmem:[#allocation2 + $0xc8] sm:$0xff] %v947
    %976 = vst [vmem:[#allocation2 + $0xd0] sm:$0xff] %v948
    %977 = vst [vmem:[#allocation2 + $0xd8] sm:$0xff] %v949
    // Predicated region
    $region54: #{fused_mul_conv_bn_add_relu.1} parent=1 // pred_check
      %p978 = pneg %p100
    $region55: #{fused_mul_conv_bn_add_relu.1} parent=1 // pred_check_branch
      %980 = sbr.rel (%p978) target = $region57
    $region56: #{fused_mul_conv_bn_add_relu.1} parent=1 // pred_region
      %v981 = vld [vmem:[#allocation2] sm:$0xff]
      %v982 = vld [vmem:[#allocation2 + $0x8] sm:$0xff]
      %v983 = vld [vmem:[#allocation2 + $0x10] sm:$0xff]
      %v984 = vld [vmem:[#allocation2 + $0x18] sm:$0xff]
      %v985 = vld [vmem:[#allocation2 + $0x20] sm:$0xff]
      %v986 = vld [vmem:[#allocation2 + $0x28] sm:$0xff]
      %v987 = vld [vmem:[#allocation2 + $0x30] sm:$0xff]
      %v988 = vld [vmem:[#allocation2 + $0x38] sm:$0xff]
      %v989 = vld [vmem:[#allocation2 + $0x40] sm:$0xff]
      %v990 = vld [vmem:[#allocation2 + $0x48] sm:$0xff]
      %v991 = vld [vmem:[#allocation2 + $0x50] sm:$0xff]
      %v992 = vld [vmem:[#allocation2 + $0x58] sm:$0xff]
      %v993 = vld [vmem:[#allocation2 + $0x60] sm:$0xff]
      %v994 = vld [vmem:[#allocation2 + $0x68] sm:$0xff]
      %v995 = vld [vmem:[#allocation2 + $0x70] sm:$0xff]
      %v996 = vld [vmem:[#allocation2 + $0x78] sm:$0xff]
      %v997 = vld [vmem:[#allocation2 + $0x80] sm:$0xff]
      %v998 = vld [vmem:[#allocation2 + $0x88] sm:$0xff]
      %v999 = vld [vmem:[#allocation2 + $0x90] sm:$0xff]
      %v1000 = vld [vmem:[#allocation2 + $0x98] sm:$0xff]
      %v1001 = vld [vmem:[#allocation2 + $0xa0] sm:$0xff]
      %v1002 = vld [vmem:[#allocation2 + $0xa8] sm:$0xff]
      %v1003 = vld [vmem:[#allocation2 + $0xb0] sm:$0xff]
      %v1004 = vld [vmem:[#allocation2 + $0xb8] sm:$0xff]
      %v1005 = vld [vmem:[#allocation2 + $0xc0] sm:$0xff]
      %v1006 = vld [vmem:[#allocation2 + $0xc8] sm:$0xff]
      %v1007 = vld [vmem:[#allocation2 + $0xd0] sm:$0xff]
      %v1008 = vld [vmem:[#allocation2 + $0xd8] sm:$0xff]
      %v1009 = vld [vmem:[#allocation9] sm:$0xf]
      %v1011 = vlaneseq
      %v1012 = vshrl.u32 %v1011, 7
      %v1013 = vsub.s32 0, %v1012
      %v1014 = vrot.slane %v1009, %v1013
      %v1015 = vlaneseq
      %v1016 = vshrl.u32 %v1015, 7
      %v1017 = vsub.s32 1, %v1016
      %v1018 = vrot.slane %v1009, %v1017
      %v1019 = vlaneseq
      %v1020 = vshrl.u32 %v1019, 7
      %v1021 = vsub.s32 2, %v1020
      %v1022 = vrot.slane %v1009, %v1021
      %v1023 = vlaneseq
      %v1024 = vshrl.u32 %v1023, 7
      %v1025 = vsub.s32 3, %v1024
      %v1026 = vrot.slane %v1009, %v1025
      %v1031 = vmul.f32 %v981, %v1014
      %v1032 = vmul.f32 %v982, %v1018
      %v1033 = vmul.f32 %v983, %v1022
      %v1034 = vmul.f32 %v984, %v1026
      %v1035 = vmul.f32 %v985, %v1014
      %v1036 = vmul.f32 %v986, %v1018
      %v1037 = vmul.f32 %v987, %v1022
      %v1038 = vmul.f32 %v988, %v1026
      %v1039 = vmul.f32 %v989, %v1014
      %v1040 = vmul.f32 %v990, %v1018
      %v1041 = vmul.f32 %v991, %v1022
      %v1042 = vmul.f32 %v992, %v1026
      %v1043 = vmul.f32 %v993, %v1014
      %v1044 = vmul.f32 %v994, %v1018
      %v1045 = vmul.f32 %v995, %v1022
      %v1046 = vmul.f32 %v996, %v1026
      %v1047 = vmul.f32 %v997, %v1014
      %v1048 = vmul.f32 %v998, %v1018
      %v1049 = vmul.f32 %v999, %v1022
      %v1050 = vmul.f32 %v1000, %v1026
      %v1051 = vmul.f32 %v1001, %v1014
      %v1052 = vmul.f32 %v1002, %v1018
      %v1053 = vmul.f32 %v1003, %v1022
      %v1054 = vmul.f32 %v1004, %v1026
      %v1055 = vmul.f32 %v1005, %v1014
      %v1056 = vmul.f32 %v1006, %v1018
      %v1057 = vmul.f32 %v1007, %v1022
      %v1058 = vmul.f32 %v1008, %v1026
      %v1059 = vld [vmem:[#allocation11] sm:$0xf]
      %v1061 = vlaneseq
      %v1062 = vshrl.u32 %v1061, 7
      %v1063 = vsub.s32 0, %v1062
      %v1064 = vrot.slane %v1059, %v1063
      %v1065 = vlaneseq
      %v1066 = vshrl.u32 %v1065, 7
      %v1067 = vsub.s32 1, %v1066
      %v1068 = vrot.slane %v1059, %v1067
      %v1069 = vlaneseq
      %v1070 = vshrl.u32 %v1069, 7
      %v1071 = vsub.s32 2, %v1070
      %v1072 = vrot.slane %v1059, %v1071
      %v1073 = vlaneseq
      %v1074 = vshrl.u32 %v1073, 7
      %v1075 = vsub.s32 3, %v1074
      %v1076 = vrot.slane %v1059, %v1075
      %v1081 = vadd.f32 %v1031, %v1064
      %v1082 = vadd.f32 %v1032, %v1068
      %v1083 = vadd.f32 %v1033, %v1072
      %v1084 = vadd.f32 %v1034, %v1076
      %v1085 = vadd.f32 %v1035, %v1064
      %v1086 = vadd.f32 %v1036, %v1068
      %v1087 = vadd.f32 %v1037, %v1072
      %v1088 = vadd.f32 %v1038, %v1076
      %v1089 = vadd.f32 %v1039, %v1064
      %v1090 = vadd.f32 %v1040, %v1068
      %v1091 = vadd.f32 %v1041, %v1072
      %v1092 = vadd.f32 %v1042, %v1076
      %v1093 = vadd.f32 %v1043, %v1064
      %v1094 = vadd.f32 %v1044, %v1068
      %v1095 = vadd.f32 %v1045, %v1072
      %v1096 = vadd.f32 %v1046, %v1076
      %v1097 = vadd.f32 %v1047, %v1064
      %v1098 = vadd.f32 %v1048, %v1068
      %v1099 = vadd.f32 %v1049, %v1072
      %v1100 = vadd.f32 %v1050, %v1076
      %v1101 = vadd.f32 %v1051, %v1064
      %v1102 = vadd.f32 %v1052, %v1068
      %v1103 = vadd.f32 %v1053, %v1072
      %v1104 = vadd.f32 %v1054, %v1076
      %v1105 = vadd.f32 %v1055, %v1064
      %v1106 = vadd.f32 %v1056, %v1068
      %v1107 = vadd.f32 %v1057, %v1072
      %v1108 = vadd.f32 %v1058, %v1076
      %v1109 = vld [vmem:[#allocation12] sm:$0xff]
      %v1110 = vld [vmem:[#allocation12 + $0x8] sm:$0xff]
      %v1111 = vld [vmem:[#allocation12 + $0x10] sm:$0xff]
      %v1112 = vld [vmem:[#allocation12 + $0x18] sm:$0xff]
      %v1113 = vld [vmem:[#allocation12 + $0x20] sm:$0xff]
      %v1114 = vld [vmem:[#allocation12 + $0x28] sm:$0xff]
      %v1115 = vld [vmem:[#allocation12 + $0x30] sm:$0xff]
      %v1116 = vld [vmem:[#allocation12 + $0x38] sm:$0xff]
      %v1117 = vld [vmem:[#allocation12 + $0x40] sm:$0xff]
      %v1118 = vld [vmem:[#allocation12 + $0x48] sm:$0xff]
      %v1119 = vld [vmem:[#allocation12 + $0x50] sm:$0xff]
      %v1120 = vld [vmem:[#allocation12 + $0x58] sm:$0xff]
      %v1121 = vld [vmem:[#allocation12 + $0x60] sm:$0xff]
      %v1122 = vld [vmem:[#allocation12 + $0x68] sm:$0xff]
      %v1123 = vld [vmem:[#allocation12 + $0x70] sm:$0xff]
      %v1124 = vld [vmem:[#allocation12 + $0x78] sm:$0xff]
      %v1125 = vld [vmem:[#allocation12 + $0x80] sm:$0xff]
      %v1126 = vld [vmem:[#allocation12 + $0x88] sm:$0xff]
      %v1127 = vld [vmem:[#allocation12 + $0x90] sm:$0xff]
      %v1128 = vld [vmem:[#allocation12 + $0x98] sm:$0xff]
      %v1129 = vld [vmem:[#allocation12 + $0xa0] sm:$0xff]
      %v1130 = vld [vmem:[#allocation12 + $0xa8] sm:$0xff]
      %v1131 = vld [vmem:[#allocation12 + $0xb0] sm:$0xff]
      %v1132 = vld [vmem:[#allocation12 + $0xb8] sm:$0xff]
      %v1133 = vld [vmem:[#allocation12 + $0xc0] sm:$0xff]
      %v1134 = vld [vmem:[#allocation12 + $0xc8] sm:$0xff]
      %v1135 = vld [vmem:[#allocation12 + $0xd0] sm:$0xff]
      %v1136 = vld [vmem:[#allocation12 + $0xd8] sm:$0xff]
      %v1137 = vadd.f32 %v1081, %v1109
      %v1138 = vadd.f32 %v1082, %v1110
      %v1139 = vadd.f32 %v1083, %v1111
      %v1140 = vadd.f32 %v1084, %v1112
      %v1141 = vadd.f32 %v1085, %v1113
      %v1142 = vadd.f32 %v1086, %v1114
      %v1143 = vadd.f32 %v1087, %v1115
      %v1144 = vadd.f32 %v1088, %v1116
      %v1145 = vadd.f32 %v1089, %v1117
      %v1146 = vadd.f32 %v1090, %v1118
      %v1147 = vadd.f32 %v1091, %v1119
      %v1148 = vadd.f32 %v1092, %v1120
      %v1149 = vadd.f32 %v1093, %v1121
      %v1150 = vadd.f32 %v1094, %v1122
      %v1151 = vadd.f32 %v1095, %v1123
      %v1152 = vadd.f32 %v1096, %v1124
      %v1153 = vadd.f32 %v1097, %v1125
      %v1154 = vadd.f32 %v1098, %v1126
      %v1155 = vadd.f32 %v1099, %v1127
      %v1156 = vadd.f32 %v1100, %v1128
      %v1157 = vadd.f32 %v1101, %v1129
      %v1158 = vadd.f32 %v1102, %v1130
      %v1159 = vadd.f32 %v1103, %v1131
      %v1160 = vadd.f32 %v1104, %v1132
      %v1161 = vadd.f32 %v1105, %v1133
      %v1162 = vadd.f32 %v1106, %v1134
      %v1163 = vadd.f32 %v1107, %v1135
      %v1164 = vadd.f32 %v1108, %v1136
      %v1165 = vmax.f32 %v1137, 0.0
      %v1166 = vmax.f32 %v1138, 0.0
      %v1167 = vmax.f32 %v1139, 0.0
      %v1168 = vmax.f32 %v1140, 0.0
      %v1169 = vmax.f32 %v1141, 0.0
      %v1170 = vmax.f32 %v1142, 0.0
      %v1171 = vmax.f32 %v1143, 0.0
      %v1172 = vmax.f32 %v1144, 0.0
      %v1173 = vmax.f32 %v1145, 0.0
      %v1174 = vmax.f32 %v1146, 0.0
      %v1175 = vmax.f32 %v1147, 0.0
      %v1176 = vmax.f32 %v1148, 0.0
      %v1177 = vmax.f32 %v1149, 0.0
      %v1178 = vmax.f32 %v1150, 0.0
      %v1179 = vmax.f32 %v1151, 0.0
      %v1180 = vmax.f32 %v1152, 0.0
      %v1181 = vmax.f32 %v1153, 0.0
      %v1182 = vmax.f32 %v1154, 0.0
      %v1183 = vmax.f32 %v1155, 0.0
      %v1184 = vmax.f32 %v1156, 0.0
      %v1185 = vmax.f32 %v1157, 0.0
      %v1186 = vmax.f32 %v1158, 0.0
      %v1187 = vmax.f32 %v1159, 0.0
      %v1188 = vmax.f32 %v1160, 0.0
      %v1189 = vmax.f32 %v1161, 0.0
      %v1190 = vmax.f32 %v1162, 0.0
      %v1191 = vmax.f32 %v1163, 0.0
      %v1192 = vmax.f32 %v1164, 0.0
      %1193 = vst [vmem:[#allocation14] sm:$0xff] %v1165
      %1194 = vst [vmem:[#allocation14 + $0x8] sm:$0xff] %v1166
      %1195 = vst [vmem:[#allocation14 + $0x10] sm:$0xff] %v1167
      %1196 = vst [vmem:[#allocation14 + $0x18] sm:$0xff] %v1168
      %1197 = vst [vmem:[#allocation14 + $0x20] sm:$0xff] %v1169
      %1198 = vst [vmem:[#allocation14 + $0x28] sm:$0xff] %v1170
      %1199 = vst [vmem:[#allocation14 + $0x30] sm:$0xff] %v1171
      %1200 = vst [vmem:[#allocation14 + $0x38] sm:$0xff] %v1172
      %1201 = vst [vmem:[#allocation14 + $0x40] sm:$0xff] %v1173
      %1202 = vst [vmem:[#allocation14 + $0x48] sm:$0xff] %v1174
      %1203 = vst [vmem:[#allocation14 + $0x50] sm:$0xff] %v1175
      %1204 = vst [vmem:[#allocation14 + $0x58] sm:$0xff] %v1176
      %1205 = vst [vmem:[#allocation14 + $0x60] sm:$0xff] %v1177
      %1206 = vst [vmem:[#allocation14 + $0x68] sm:$0xff] %v1178
      %1207 = vst [vmem:[#allocation14 + $0x70] sm:$0xff] %v1179
      %1208 = vst [vmem:[#allocation14 + $0x78] sm:$0xff] %v1180
      %1209 = vst [vmem:[#allocation14 + $0x80] sm:$0xff] %v1181
      %1210 = vst [vmem:[#allocation14 + $0x88] sm:$0xff] %v1182
      %1211 = vst [vmem:[#allocation14 + $0x90] sm:$0xff] %v1183
      %1212 = vst [vmem:[#allocation14 + $0x98] sm:$0xff] %v1184
      %1213 = vst [vmem:[#allocation14 + $0xa0] sm:$0xff] %v1185
      %1214 = vst [vmem:[#allocation14 + $0xa8] sm:$0xff] %v1186
      %1215 = vst [vmem:[#allocation14 + $0xb0] sm:$0xff] %v1187
      %1216 = vst [vmem:[#allocation14 + $0xb8] sm:$0xff] %v1188
      %1217 = vst [vmem:[#allocation14 + $0xc0] sm:$0xff] %v1189
      %1218 = vst [vmem:[#allocation14 + $0xc8] sm:$0xff] %v1190
      %1219 = vst [vmem:[#allocation14 + $0xd0] sm:$0xff] %v1191
      %1220 = vst [vmem:[#allocation14 + $0xd8] sm:$0xff] %v1192
    $region57: #{fused_mul_conv_bn_add_relu.1} parent=1 // pred_fallthru
      _
    // Predicated region
    $region58: #{fused_mul_conv_bn_add_relu.1} parent=1 // pred_check
      _
    $region59: #{fused_mul_conv_bn_add_relu.1} parent=1 // pred_check_branch
      %1222 = sbr.rel (0) target = $region61
    $region60: #{fused_mul_conv_bn_add_relu.1} parent=1 // pred_region
      %s1224 = ssub.s32 3584, 3584
      %1225 = vsyncadd [#allocation5], %s1224
      %s1226 = sshll.u32 [#allocation14], 4
      %s1227 = int_to_ptr.vmem [resolvable:$true] %s1226
      %1232 = dma.vmem_to_hbm [thread:$0]  %s1227, 3584, %s6, [#allocation5], 512, 512, 32
    $region61: #{fused_mul_conv_bn_add_relu.1} parent=1 // pred_fallthru
      _
    // Predicated region
    $region62: #{fused_mul_conv_bn_add_relu.1} parent=1 // pred_check
      _
    $region63: #{fused_mul_conv_bn_add_relu.1} parent=1 // pred_check_branch
      %1234 = sbr.rel (0) target = $region65
    $region64: #{fused_mul_conv_bn_add_relu.1} parent=1 // pred_region
      %1235 = dma.done [#allocation5], 3584
    $region65: #{fused_mul_conv_bn_add_relu.1} parent=1 // pred_fallthru
      _
    %1236 = vsyncpa [#allocation4], 1
    %1237 = vsyncpa [#allocation7], 1
    %1238 = vsyncpa [#allocation10], 1
    %1239 = vsyncpa [#allocation13], 1
    %1240 = vsyncpa [#allocation5], 1

</llo_original>
